<compile_context>
chip_gen: v7x
topology: tpu7x:2x2x1
jax: 0.10.0
libtpu: 0.0.40
codegen_flags: <defaults>
</compile_context>

<pallas_src>
import functools

import jax
import jax.numpy as jnp
from jax.experimental import pallas as pl
from jax.experimental.pallas import tpu as pltpu


def _gelu(x):
    # TODO(synk): PyTorch nn.GELU() default is the exact erf form; the tanh
    # approximation (matches to ~1e-3) is used because erf lowering on Mosaic
    # is not guaranteed.
    c = 0.7978845608028654  # sqrt(2/pi)
    return 0.5 * x * (1.0 + jnp.tanh(c * (x + 0.044715 * x * x * x)))


def _softplus(x):
    # numerically stable log(1 + exp(x))
    return jnp.maximum(x, 0.0) + jnp.log1p(jnp.exp(-jnp.abs(x)))


def _round_up(x, m):
    return ((x + m - 1) // m) * m


def _mxu_row_cap():
    """Per-step batch-tile cap: v5e MXU has 128 rows; v6e/v7x have 256."""
    try:
        kind = jax.devices()[0].device_kind.lower()
    except Exception:
        return 256
    if "v5 lite" in kind or "v5lite" in kind or "v5e" in kind:
        return 128
    return 256


def fusion_head_kernel(
    vis_ref,    # (T, Bt, F)        bf16  vision tokens (cls + patches), batch-minor-2 layout
    txt_ref,    # (Bt, 2F)          bf16  [text1_cls | text2_cls]
    wproj_ref,  # (4F, F)           bf16  rows [0:2F]=fused text proj (0.5 blend folded),
                #                          rows [2F:4F]=final proj [wf_img/T ; wf_txt]
    wreg_ref,   # (F+H, H)          bf16  rows [0:F]=wr1, rows [F:F+H]=wr2
    bias_ref,   # (1, 2F+3H+128)    f32   [b_text | bf | br1 | br2 | wr3_row | br3*ones(128)]
    out_ref,    # (Bt, 128)         f32   lane-dense output; column 0 = prediction
    *, F, H,
):
    f32 = jnp.float32
    bf16 = jnp.bfloat16

    # ---- static, lane/sublane-aligned slices of the packed weight slabs.
    o_btext, o_bf = 0, F
    o_br1, o_br2 = 2 * F, 2 * F + H
    o_wr3, o_br3 = 2 * F + 2 * H, 2 * F + 3 * H

    b_text = bias_ref[:, o_btext:o_btext + F]      # (1, F)
    bf_b = bias_ref[:, o_bf:o_bf + F]              # (1, F)
    br1 = bias_ref[:, o_br1:o_br1 + H]             # (1, H)
    br2 = bias_ref[:, o_br2:o_br2 + H]             # (1, H)
    wr3_row = bias_ref[:, o_wr3:o_wr3 + H]         # (1, H)
    br3 = bias_ref[:, o_br3:o_br3 + 128]           # (1, 128), br3 broadcast over lanes

    # ---- vision branch: token sum over T (1/T folded into wf_img host-side);
    #      vision projection is Identity.  (T, Bt, F) -> T-1 elementwise adds.
    out_image = jnp.sum(vis_ref[...], axis=0, dtype=f32)            # (Bt, F) f32

    # ---- text branch: both projections + 0.5/0.5 blend as one K=2F matmul.
    out_text = (
        jnp.dot(txt_ref[...], wproj_ref[0:2 * F, :], preferred_element_type=f32)
        + b_text
    )                                                                # (Bt, F) f32

    # ---- final_projection(cat([out_image, out_text], dim=1)) as one K=2F matmul.
    fused_in = jnp.concatenate(
        [out_image.astype(bf16), out_text.astype(bf16)], axis=-1)    # (Bt, 2F) bf16
    fused = (
        jnp.dot(fused_in, wproj_ref[2 * F:4 * F, :], preferred_element_type=f32)
        + bf_b
    )                                                                # (Bt, F) f32

    # ---- regression head (Dropout = identity in eval mode).
    h = _gelu(jnp.dot(fused.astype(bf16), wreg_ref[0:F, :],
                      preferred_element_type=f32) + br1)             # (Bt, H)
    h = _gelu(jnp.dot(h.astype(bf16), wreg_ref[F:F + H, :],
                      preferred_element_type=f32) + br2)             # (Bt, H)

    # ---- final Linear(H, 1): VPU multiply + lane reduction (skip an N=1 MXU matmul).
    z = jnp.sum(h * wr3_row, axis=-1, keepdims=True)                 # (Bt, 1)

    # Lane-dense store (last dim 128); the wrapper keeps column 0 only.
    out_ref[...] = _softplus(jnp.broadcast_to(z, out_ref.shape) + br3)


def prepare_fused_params(params, num_tokens, compute_dtype=jnp.bfloat16):
    """Host-side, one-time weight prep.

    Folds the 0.5/0.5 blend into the text projection, folds 1/T into the image
    half of final_projection, packs all matmul weights into two bf16 slabs and
    all small f32 vectors into one bias slab (cuts kernel inputs 13 -> 5)."""
    f32 = jnp.float32
    F = params["wt1"].shape[0]
    H = params["wr1"].shape[1]

    w_text = jnp.concatenate([0.5 * params["wt1"], 0.5 * params["wt2"]], axis=0)  # (2F, F)
    wf_cat = jnp.concatenate([params["wf_img"] / num_tokens, params["wf_txt"]],
                             axis=0)                                               # (2F, F)
    w_proj = jnp.concatenate([w_text, wf_cat], axis=0).astype(compute_dtype)       # (4F, F)

    w_reg = jnp.concatenate([params["wr1"], params["wr2"]],
                            axis=0).astype(compute_dtype)                          # (F+H, H)

    b_text = 0.5 * (params["bt1"] + params["bt2"])                                 # (1, F)
    bias_slab = jnp.concatenate(
        [b_text,                              # [0      : F     ]
         params["bf"],                        # [F      : 2F    ]
         params["br1"],                       # [2F     : 2F+H  ]
         params["br2"],                       # [2F+H   : 2F+2H ]
         params["wr3"].T,                     # [2F+2H  : 2F+3H ]  (wr3 as a row)
         jnp.broadcast_to(params["br3"], (1, 128))],  # [2F+3H : +128]  br3 per lane
        axis=-1).astype(f32)                                                        # (1, 2F+3H+128)

    return w_proj, w_reg, bias_slab


def dinov2_finetune_forward(vis_tokens, text1_cls, text2_cls, params, *,
                            block_b=None, compute_dtype=jnp.bfloat16):
    """Batch-gridded pallas_call.  Per-sample streams are tiled on B; the
    packed weight slabs stay resident in VMEM.  Output is lane-dense (B, 128)
    and sliced to (B, 1) here."""
    B, T, F = vis_tokens.shape
    H = params["wr1"].shape[1]

    w_proj, w_reg, bias_slab = prepare_fused_params(params, T, compute_dtype)

    # Per-step batch tile: as big as the MXU row dimension allows, so small
    # batches run in a single grid step (per-step fixed cost ~0.35us dominates
    # this ~5 MFLOP/step kernel).
    if block_b is None:
        block_b = min(_round_up(B, 16), _mxu_row_cap())
    block_b = max(16, _round_up(block_b, 16))
    n_blocks = pl.cdiv(B, block_b)
    Bp = n_blocks * block_b
    pad = Bp - B

    # (T, B, F) layout: per-step vision tiles are (block_b, F) -> no sublane
    # padding of tiny (T=9, F) tiles, and the token pooling becomes T-1
    # elementwise adds inside the kernel instead of a cross-sublane reduce.
    vis_t = jnp.transpose(
        jnp.pad(vis_tokens, ((0, pad), (0, 0), (0, 0))).astype(compute_dtype),
        (1, 0, 2))                                                    # (T, Bp, F)
    txt = jnp.pad(jnp.concatenate([text1_cls, text2_cls], axis=-1),
                  ((0, pad), (0, 0))).astype(compute_dtype)           # (Bp, 2F)

    OUT_LANES = 128

    def run(single_buffer_weights):
        def resident(shape):
            # Weight BlockSpec: constant block index -> fetched once, stays
            # resident in VMEM across all grid steps.  Single-buffer it: a
            # second pipeline buffer for a never-changing block is pure waste.
            nd = len(shape)
            idx = lambda i, _nd=nd: (0,) * _nd
            if single_buffer_weights:
                return pl.BlockSpec(shape, idx, pipeline_mode=pl.Buffered(1))
            return pl.BlockSpec(shape, idx)

        grid_spec = pltpu.PrefetchScalarGridSpec(
            num_scalar_prefetch=0,
            grid=(n_blocks,),
            in_specs=[
                # Per-sample streams: tiled on B, pipelined by Pallas.
                pl.BlockSpec((T, block_b, F), lambda i: (0, i, 0)),
                pl.BlockSpec((block_b, 2 * F), lambda i: (i, 0)),
                # Packed, resident weights.
                resident(w_proj.shape),
                resident(w_reg.shape),
                resident(bias_slab.shape),
            ],
            out_specs=pl.BlockSpec((block_b, OUT_LANES), lambda i: (i, 0)),
        )

        return pl.pallas_call(
            functools.partial(fusion_head_kernel, F=F, H=H),
            out_shape=jax.ShapeDtypeStruct((Bp, OUT_LANES), jnp.float32),
            grid_spec=grid_spec,
            compiler_params=pltpu.CompilerParams(
                # Only shard across TensorCores when there is >1 batch tile;
                # splitting a single overhead-bound tile just duplicates the
                # fixed per-step cost and the weight-DMA prologue.
                dimension_semantics=("parallel",) if n_blocks > 1 else ("arbitrary",),
                # Actual footprint is ~2-3 MiB even at block_b=256; 16 MiB
                # documents the budget with ample headroom on all generations.
                vmem_limit_bytes=16 * 1024 * 1024,
            ),
        )(vis_t, txt, w_proj, w_reg, bias_slab)

    try:
        out = run(single_buffer_weights=True)
    except Exception:
        # Older JAX builds without BlockSpec pipeline_mode / Buffered(1):
        # fall back to default (double-buffered) resident weights; results
        # are identical, only the prologue is slightly heavier.
        out = run(single_buffer_weights=False)

    return out[:B, :1]


def reference_forward(vis_tokens, text1_cls, text2_cls, params):
    """Pure-JAX f32 reference with the original (unfused) module math."""
    hi = jax.lax.Precision.HIGHEST
    out_image = jnp.mean(vis_tokens, axis=1)
    ot1 = jnp.dot(text1_cls, params["wt1"], precision=hi) + params["bt1"]
    ot2 = jnp.dot(text2_cls, params["wt2"], precision=hi) + params["bt2"]
    out_text = 0.5 * ot1 + 0.5 * ot2
    fused = (jnp.dot(out_image, params["wf_img"], precision=hi)
             + jnp.dot(out_text, params["wf_txt"], precision=hi)
             + params["bf"])
    h = _gelu(jnp.dot(fused, params["wr1"], precision=hi) + params["br1"])
    h = _gelu(jnp.dot(h, params["wr2"], precision=hi) + params["br2"])
    z = jnp.dot(h, params["wr3"], precision=hi) + params["br3"]
    return _softplus(z)


def make_params(key, fusion_dim, hidden):
    """Deterministic synthetic parameters (module shapes, small aligned dims).
    Weights stored (in_features, out_features) so kernels compute x @ W + b."""
    ks = jax.random.split(key, 10)
    F, H = fusion_dim, hidden

    def lin_w(k, fan_in, fan_out):
        bound = (6.0 / (fan_in + fan_out)) ** 0.5  # xavier-uniform
        return jax.random.uniform(k, (fan_in, fan_out), jnp.float32, -bound, bound)

    def lin_b(k, fan_in, fan_out):
        bound = 1.0 / (fan_in ** 0.5)              # PyTorch default Linear bias init
        return jax.random.uniform(k, (1, fan_out), jnp.float32, -bound, bound)

    return {
        # text_projection_1 / text_projection_2 : Linear(text_dim, fusion_dim)
        "wt1": lin_w(ks[0], F, F), "bt1": lin_b(ks[1], F, F),
        "wt2": lin_w(ks[2], F, F), "bt2": lin_b(ks[3], F, F),
        # final_projection : Linear(2*F, F), stored split along the input axis
        "wf_img": lin_w(ks[4], F, F), "wf_txt": lin_w(ks[5], F, F),
        "bf": lin_b(ks[6], 2 * F, F),
        # regression head : xavier weights, zero biases (per module spec)
        "wr1": lin_w(ks[7], F, H), "br1": jnp.zeros((1, H), jnp.float32),
        "wr2": lin_w(ks[8], H, H), "br2": jnp.zeros((1, H), jnp.float32),
        "wr3": lin_w(ks[9], H, 1), "br3": jnp.zeros((1, 1), jnp.float32),
    }


if __name__ == "__main__":
    # Small but lane-aligned shapes consistent with the forward pass:
    #   B=32 samples (single grid step), T=9 vision tokens (1 cls + 8 patches),
    #   vision_dim = text_dim = fusion_dim = 128, regression hidden = 256.
    B, T, F, H = 32, 9, 128, 256

    key = jax.random.PRNGKey(0)
    k_vis, k_t1, k_t2, k_params = jax.random.split(key, 4)

    vis_tokens = jax.random.normal(k_vis, (B, T, F), jnp.float32)  # backbone tokens
    text1_cls = jax.random.normal(k_t1, (B, F), jnp.float32)       # BERT #1 CLS
    text2_cls = jax.random.normal(k_t2, (B, F), jnp.float32)       # BERT #2 CLS
    params = make_params(k_params, F, H)

    pred = dinov2_finetune_forward(vis_tokens, text1_cls, text2_cls, params)
    pred = jax.block_until_ready(pred)

    ref = reference_forward(vis_tokens, text1_cls, text2_cls, params)
    assert pred.shape == (B, 1), pred.shape
    # bf16 matmul operands / bf16-quantized streams (f32 accumulation) vs. a
    # full-f32 reference -> loose-ish tolerance.
    assert jnp.allclose(pred, ref, rtol=5e-2, atol=5e-2), (
        float(jnp.max(jnp.abs(pred - ref))), pred[:4], ref[:4])

    print("KERNEL_OK")
</pallas_src>

<mosaic_0001>
module attributes {stable_mosaic.version = 11 : i64} {
  func.func @fusion_head_kernel(%arg0: i32, %arg1: memref<9x32x128xbf16, #tpu.memory_space<vmem>>, %arg2: memref<32x256xbf16, #tpu.memory_space<vmem>>, %arg3: memref<512x128xbf16, #tpu.memory_space<vmem>>, %arg4: memref<384x256xbf16, #tpu.memory_space<vmem>>, %arg5: memref<1x1152xf32, #tpu.memory_space<vmem>>, %arg6: memref<32x128xf32, #tpu.memory_space<vmem>>) attributes {dimension_semantics = [#tpu.dimension_semantics<arbitrary>], iteration_bounds = array<i64: 1>, scalar_prefetch = 0 : i64, scratch_operands = 0 : i64, tpu.core_type = #tpu.core_type<tc>, window_params = [{transform_indices = @transform_0, window_bounds = array<i64: 9, 32, 128>}, {transform_indices = @transform_1, window_bounds = array<i64: 32, 256>}, {pipeline_mode = #tpu.pipeline_mode<synchronous>, transform_indices = @transform_2, window_bounds = array<i64: 512, 128>}, {pipeline_mode = #tpu.pipeline_mode<synchronous>, transform_indices = @transform_3, window_bounds = array<i64: 384, 256>}, {pipeline_mode = #tpu.pipeline_mode<synchronous>, transform_indices = @transform_4, window_bounds = array<i64: 1, 1152>}, {transform_indices = @transform_5, window_bounds = array<i64: 32, 128>}]} {
    %c0 = arith.constant 0 : index
    %c0_0 = arith.constant 0 : index
    %0 = vector.load %arg5[%c0, %c0_0] : memref<1x1152xf32, #tpu.memory_space<vmem>>, vector<1x128xf32>
    %c0_1 = arith.constant 0 : index
    %c128 = arith.constant 128 : index
    %1 = vector.load %arg5[%c0_1, %c128] : memref<1x1152xf32, #tpu.memory_space<vmem>>, vector<1x128xf32>
    %c0_2 = arith.constant 0 : index
    %c256 = arith.constant 256 : index
    %2 = vector.load %arg5[%c0_2, %c256] : memref<1x1152xf32, #tpu.memory_space<vmem>>, vector<1x256xf32>
    %c0_3 = arith.constant 0 : index
    %c512 = arith.constant 512 : index
    %3 = vector.load %arg5[%c0_3, %c512] : memref<1x1152xf32, #tpu.memory_space<vmem>>, vector<1x256xf32>
    %c0_4 = arith.constant 0 : index
    %c768 = arith.constant 768 : index
    %4 = vector.load %arg5[%c0_4, %c768] : memref<1x1152xf32, #tpu.memory_space<vmem>>, vector<1x256xf32>
    %c0_5 = arith.constant 0 : index
    %c1024 = arith.constant 1024 : index
    %5 = vector.load %arg5[%c0_5, %c1024] : memref<1x1152xf32, #tpu.memory_space<vmem>>, vector<1x128xf32>
    %c0_6 = arith.constant 0 : index
    %c0_7 = arith.constant 0 : index
    %c0_8 = arith.constant 0 : index
    %6 = vector.load %arg1[%c0_6, %c0_7, %c0_8] : memref<9x32x128xbf16, #tpu.memory_space<vmem>>, vector<9x32x128xbf16>
    %7 = arith.extf %6 : vector<9x32x128xbf16> to vector<9x32x128xf32>
    %cst = arith.constant dense<0.000000e+00> : vector<32x128xf32>
    %8 = vector.multi_reduction <add>, %7, %cst [0] : vector<9x32x128xf32> to vector<32x128xf32>
    %c0_9 = arith.constant 0 : index
    %c0_10 = arith.constant 0 : index
    %9 = vector.load %arg2[%c0_9, %c0_10] : memref<32x256xbf16, #tpu.memory_space<vmem>>, vector<32x256xbf16>
    %c0_11 = arith.constant 0 : index
    %c0_12 = arith.constant 0 : index
    %10 = vector.load %arg3[%c0_11, %c0_12] : memref<512x128xbf16, #tpu.memory_space<vmem>>, vector<256x128xbf16>
    %cst_13 = arith.constant dense<0.000000e+00> : vector<32x128xf32>
    %11 = tpu.matmul %9, %10, %cst_13 {dimension_numbers = #tpu.dot_dimension_numbers<[1], [0], [0], [1], [0, 0, 1, 1], [], []>} : vector<32x256xbf16>, vector<256x128xbf16>, vector<32x128xf32> -> vector<32x128xf32>
    %12 = vector.broadcast %0 : vector<1x128xf32> to vector<32x128xf32>
    %13 = arith.addf %11, %12 : vector<32x128xf32>
    %14 = arith.truncf %8 : vector<32x128xf32> to vector<32x128xbf16>
    %15 = arith.truncf %13 : vector<32x128xf32> to vector<32x128xbf16>
    %16 = tpu.concatenate %14, %15 in 1 : vector<32x128xbf16>, vector<32x128xbf16> -> vector<32x256xbf16>
    %c256_14 = arith.constant 256 : index
    %c0_15 = arith.constant 0 : index
    %17 = vector.load %arg3[%c256_14, %c0_15] : memref<512x128xbf16, #tpu.memory_space<vmem>>, vector<256x128xbf16>
    %cst_16 = arith.constant dense<0.000000e+00> : vector<32x128xf32>
    %18 = tpu.matmul %16, %17, %cst_16 {dimension_numbers = #tpu.dot_dimension_numbers<[1], [0], [0], [1], [0, 0, 1, 1], [], []>} : vector<32x256xbf16>, vector<256x128xbf16>, vector<32x128xf32> -> vector<32x128xf32>
    %19 = vector.broadcast %1 : vector<1x128xf32> to vector<32x128xf32>
    %20 = arith.addf %18, %19 : vector<32x128xf32>
    %21 = arith.truncf %20 : vector<32x128xf32> to vector<32x128xbf16>
    %c0_17 = arith.constant 0 : index
    %c0_18 = arith.constant 0 : index
    %22 = vector.load %arg4[%c0_17, %c0_18] : memref<384x256xbf16, #tpu.memory_space<vmem>>, vector<128x256xbf16>
    %cst_19 = arith.constant dense<0.000000e+00> : vector<32x256xf32>
    %23 = tpu.matmul %21, %22, %cst_19 {dimension_numbers = #tpu.dot_dimension_numbers<[1], [0], [0], [1], [0, 0, 1, 1], [], []>} : vector<32x128xbf16>, vector<128x256xbf16>, vector<32x256xf32> -> vector<32x256xf32>
    %24 = vector.broadcast %2 : vector<1x256xf32> to vector<32x256xf32>
    %25 = arith.addf %23, %24 : vector<32x256xf32>
    %cst_20 = arith.constant 5.000000e-01 : f32
    %26 = vector.broadcast %cst_20 : f32 to vector<32x256xf32>
    %27 = arith.mulf %26, %25 : vector<32x256xf32>
    %cst_21 = arith.constant 4.471500e-02 : f32
    %28 = vector.broadcast %cst_21 : f32 to vector<32x256xf32>
    %29 = arith.mulf %28, %25 : vector<32x256xf32>
    %30 = arith.mulf %29, %25 : vector<32x256xf32>
    %31 = arith.mulf %30, %25 : vector<32x256xf32>
    %32 = arith.addf %25, %31 : vector<32x256xf32>
    %cst_22 = arith.constant 0.797884583 : f32
    %33 = vector.broadcast %cst_22 : f32 to vector<32x256xf32>
    %34 = arith.mulf %33, %32 : vector<32x256xf32>
    %35 = math.tanh %34 : vector<32x256xf32>
    %cst_23 = arith.constant 1.000000e+00 : f32
    %36 = vector.broadcast %cst_23 : f32 to vector<32x256xf32>
    %37 = arith.addf %36, %35 : vector<32x256xf32>
    %38 = arith.mulf %27, %37 : vector<32x256xf32>
    %39 = arith.truncf %38 : vector<32x256xf32> to vector<32x256xbf16>
    %c128_24 = arith.constant 128 : index
    %c0_25 = arith.constant 0 : index
    %40 = vector.load %arg4[%c128_24, %c0_25] : memref<384x256xbf16, #tpu.memory_space<vmem>>, vector<256x256xbf16>
    %cst_26 = arith.constant dense<0.000000e+00> : vector<32x256xf32>
    %41 = tpu.matmul %39, %40, %cst_26 {dimension_numbers = #tpu.dot_dimension_numbers<[1], [0], [0], [1], [0, 0, 1, 1], [], []>} : vector<32x256xbf16>, vector<256x256xbf16>, vector<32x256xf32> -> vector<32x256xf32>
    %42 = vector.broadcast %3 : vector<1x256xf32> to vector<32x256xf32>
    %43 = arith.addf %41, %42 : vector<32x256xf32>
    %cst_27 = arith.constant 5.000000e-01 : f32
    %44 = vector.broadcast %cst_27 : f32 to vector<32x256xf32>
    %45 = arith.mulf %44, %43 : vector<32x256xf32>
    %cst_28 = arith.constant 4.471500e-02 : f32
    %46 = vector.broadcast %cst_28 : f32 to vector<32x256xf32>
    %47 = arith.mulf %46, %43 : vector<32x256xf32>
    %48 = arith.mulf %47, %43 : vector<32x256xf32>
    %49 = arith.mulf %48, %43 : vector<32x256xf32>
    %50 = arith.addf %43, %49 : vector<32x256xf32>
    %cst_29 = arith.constant 0.797884583 : f32
    %51 = vector.broadcast %cst_29 : f32 to vector<32x256xf32>
    %52 = arith.mulf %51, %50 : vector<32x256xf32>
    %53 = math.tanh %52 : vector<32x256xf32>
    %cst_30 = arith.constant 1.000000e+00 : f32
    %54 = vector.broadcast %cst_30 : f32 to vector<32x256xf32>
    %55 = arith.addf %54, %53 : vector<32x256xf32>
    %56 = arith.mulf %45, %55 : vector<32x256xf32>
    %57 = vector.broadcast %4 : vector<1x256xf32> to vector<32x256xf32>
    %58 = arith.mulf %56, %57 : vector<32x256xf32>
    %cst_31 = arith.constant dense<0.000000e+00> : vector<32xf32>
    %59 = vector.multi_reduction <add>, %58, %cst_31 [1] : vector<32x256xf32> to vector<32xf32>
    %60 = vector.shape_cast %59 : vector<32xf32> to vector<32x1xf32>
    %61 = vector.shape_cast %60 : vector<32x1xf32> to vector<32x1xf32>
    %62 = vector.broadcast %61 : vector<32x1xf32> to vector<32x128xf32>
    %63 = vector.broadcast %5 : vector<1x128xf32> to vector<32x128xf32>
    %64 = arith.addf %62, %63 : vector<32x128xf32>
    %cst_32 = arith.constant 0.000000e+00 : f32
    %65 = vector.broadcast %cst_32 : f32 to vector<32x128xf32>
    %66 = arith.maximumf %64, %65 : vector<32x128xf32>
    %67 = math.absf %64 : vector<32x128xf32>
    %cst_33 = arith.constant 0.000000e+00 : f32
    %68 = vector.broadcast %cst_33 : f32 to vector<32x128xf32>
    %69 = arith.subf %68, %67 : vector<32x128xf32>
    %70 = math.exp %69 : vector<32x128xf32>
    %71 = math.log1p %70 : vector<32x128xf32>
    %72 = arith.addf %66, %71 : vector<32x128xf32>
    %c0_34 = arith.constant 0 : index
    %c0_35 = arith.constant 0 : index
    %73 = vector.load %arg6[%c0_34, %c0_35] : memref<32x128xf32, #tpu.memory_space<vmem>>, vector<32x128xf32>
    tpu.vector_store %arg6[%c0_34, %c0_35], %72 {strides = array<i32>} : memref<32x128xf32, #tpu.memory_space<vmem>>, vector<32x128xf32>,
    return
  }
  func.func @transform_0(%arg0: i32) -> (i32, i32, i32) {
    %c0_i32 = arith.constant 0 : i32
    %c0_i32_0 = arith.constant 0 : i32
    %c0_i32_1 = arith.constant 0 : i32
    return %c0_i32, %arg0, %c0_i32_0 : i32, i32, i32
  }
  func.func @transform_1(%arg0: i32) -> (i32, i32) {
    %c0_i32 = arith.constant 0 : i32
    %c0_i32_0 = arith.constant 0 : i32
    return %arg0, %c0_i32 : i32, i32
  }
  func.func @transform_2(%arg0: i32) -> (i32, i32) {
    %c0_i32 = arith.constant 0 : i32
    %c0_i32_0 = arith.constant 0 : i32
    %c0_i32_1 = arith.constant 0 : i32
    return %c0_i32, %c0_i32_0 : i32, i32
  }
  func.func @transform_3(%arg0: i32) -> (i32, i32) {
    %c0_i32 = arith.constant 0 : i32
    %c0_i32_0 = arith.constant 0 : i32
    %c0_i32_1 = arith.constant 0 : i32
    return %c0_i32, %c0_i32_0 : i32, i32
  }
  func.func @transform_4(%arg0: i32) -> (i32, i32) {
    %c0_i32 = arith.constant 0 : i32
    %c0_i32_0 = arith.constant 0 : i32
    %c0_i32_1 = arith.constant 0 : i32
    return %c0_i32, %c0_i32_0 : i32, i32
  }
  func.func @transform_5(%arg0: i32) -> (i32, i32) {
    %c0_i32 = arith.constant 0 : i32
    %c0_i32_0 = arith.constant 0 : i32
    return %arg0, %c0_i32 : i32, i32
  }
}

module attributes {stable_mosaic.version = 11 : i64} {
  func.func @fusion_head_kernel(%arg0: i32, %arg1: memref<9x32x128xbf16, #tpu.memory_space<vmem>>, %arg2: memref<32x256xbf16, #tpu.memory_space<vmem>>, %arg3: memref<512x128xbf16, #tpu.memory_space<vmem>>, %arg4: memref<384x256xbf16, #tpu.memory_space<vmem>>, %arg5: memref<1x1152xf32, #tpu.memory_space<vmem>>, %arg6: memref<32x128xf32, #tpu.memory_space<vmem>>) attributes {dimension_semantics = [#tpu.dimension_semantics<arbitrary>], iteration_bounds = array<i64: 1>, scalar_prefetch = 0 : i64, scratch_operands = 0 : i64, tpu.core_type = #tpu.core_type<tc>, window_params = [{transform_indices = @transform_0, window_bounds = array<i64: 9, 32, 128>}, {transform_indices = @transform_1, window_bounds = array<i64: 32, 256>}, {pipeline_mode = #tpu.pipeline_mode<synchronous>, transform_indices = @transform_2, window_bounds = array<i64: 512, 128>}, {pipeline_mode = #tpu.pipeline_mode<synchronous>, transform_indices = @transform_3, window_bounds = array<i64: 384, 256>}, {pipeline_mode = #tpu.pipeline_mode<synchronous>, transform_indices = @transform_4, window_bounds = array<i64: 1, 1152>}, {transform_indices = @transform_5, window_bounds = array<i64: 32, 128>}]} {
    %c0 = arith.constant 0 : index
    %c0_0 = arith.constant 0 : index
    %0 = vector.load %arg5[%c0, %c0_0] : memref<1x1152xf32, #tpu.memory_space<vmem>>, vector<1x128xf32>
    %c0_1 = arith.constant 0 : index
    %c128 = arith.constant 128 : index
    %1 = vector.load %arg5[%c0_1, %c128] : memref<1x1152xf32, #tpu.memory_space<vmem>>, vector<1x128xf32>
    %c0_2 = arith.constant 0 : index
    %c256 = arith.constant 256 : index
    %2 = vector.load %arg5[%c0_2, %c256] : memref<1x1152xf32, #tpu.memory_space<vmem>>, vector<1x256xf32>
    %c0_3 = arith.constant 0 : index
    %c512 = arith.constant 512 : index
    %3 = vector.load %arg5[%c0_3, %c512] : memref<1x1152xf32, #tpu.memory_space<vmem>>, vector<1x256xf32>
    %c0_4 = arith.constant 0 : index
    %c768 = arith.constant 768 : index
    %4 = vector.load %arg5[%c0_4, %c768] : memref<1x1152xf32, #tpu.memory_space<vmem>>, vector<1x256xf32>
    %c0_5 = arith.constant 0 : index
    %c1024 = arith.constant 1024 : index
    %5 = vector.load %arg5[%c0_5, %c1024] : memref<1x1152xf32, #tpu.memory_space<vmem>>, vector<1x128xf32>
    %c0_6 = arith.constant 0 : index
    %c0_7 = arith.constant 0 : index
    %c0_8 = arith.constant 0 : index
    %6 = vector.load %arg1[%c0_6, %c0_7, %c0_8] : memref<9x32x128xbf16, #tpu.memory_space<vmem>>, vector<9x32x128xbf16>
    %7 = arith.extf %6 : vector<9x32x128xbf16> to vector<9x32x128xf32>
    %cst = arith.constant dense<0.000000e+00> : vector<32x128xf32>
    %8 = vector.multi_reduction <add>, %7, %cst [0] : vector<9x32x128xf32> to vector<32x128xf32>
    %c0_9 = arith.constant 0 : index
    %c0_10 = arith.constant 0 : index
    %9 = vector.load %arg2[%c0_9, %c0_10] : memref<32x256xbf16, #tpu.memory_space<vmem>>, vector<32x256xbf16>
    %c0_11 = arith.constant 0 : index
    %c0_12 = arith.constant 0 : index
    %10 = vector.load %arg3[%c0_11, %c0_12] : memref<512x128xbf16, #tpu.memory_space<vmem>>, vector<256x128xbf16>
    %cst_13 = arith.constant dense<0.000000e+00> : vector<32x128xf32>
    %11 = tpu.matmul %9, %10, %cst_13 {dimension_numbers = #tpu.dot_dimension_numbers<[1], [0], [0], [1], [0, 0, 1, 1], [], []>} : vector<32x256xbf16>, vector<256x128xbf16>, vector<32x128xf32> -> vector<32x128xf32>
    %12 = vector.broadcast %0 : vector<1x128xf32> to vector<32x128xf32>
    %13 = arith.addf %11, %12 : vector<32x128xf32>
    %14 = arith.truncf %8 : vector<32x128xf32> to vector<32x128xbf16>
    %15 = arith.truncf %13 : vector<32x128xf32> to vector<32x128xbf16>
    %16 = tpu.concatenate %14, %15 in 1 : vector<32x128xbf16>, vector<32x128xbf16> -> vector<32x256xbf16>
    %c256_14 = arith.constant 256 : index
    %c0_15 = arith.constant 0 : index
    %17 = vector.load %arg3[%c256_14, %c0_15] : memref<512x128xbf16, #tpu.memory_space<vmem>>, vector<256x128xbf16>
    %cst_16 = arith.constant dense<0.000000e+00> : vector<32x128xf32>
    %18 = tpu.matmul %16, %17, %cst_16 {dimension_numbers = #tpu.dot_dimension_numbers<[1], [0], [0], [1], [0, 0, 1, 1], [], []>} : vector<32x256xbf16>, vector<256x128xbf16>, vector<32x128xf32> -> vector<32x128xf32>
    %19 = vector.broadcast %1 : vector<1x128xf32> to vector<32x128xf32>
    %20 = arith.addf %18, %19 : vector<32x128xf32>
    %21 = arith.truncf %20 : vector<32x128xf32> to vector<32x128xbf16>
    %c0_17 = arith.constant 0 : index
    %c0_18 = arith.constant 0 : index
    %22 = vector.load %arg4[%c0_17, %c0_18] : memref<384x256xbf16, #tpu.memory_space<vmem>>, vector<128x256xbf16>
    %cst_19 = arith.constant dense<0.000000e+00> : vector<32x256xf32>
    %23 = tpu.matmul %21, %22, %cst_19 {dimension_numbers = #tpu.dot_dimension_numbers<[1], [0], [0], [1], [0, 0, 1, 1], [], []>} : vector<32x128xbf16>, vector<128x256xbf16>, vector<32x256xf32> -> vector<32x256xf32>
    %24 = vector.broadcast %2 : vector<1x256xf32> to vector<32x256xf32>
    %25 = arith.addf %23, %24 : vector<32x256xf32>
    %cst_20 = arith.constant 5.000000e-01 : f32
    %26 = vector.broadcast %cst_20 : f32 to vector<32x256xf32>
    %27 = arith.mulf %26, %25 : vector<32x256xf32>
    %cst_21 = arith.constant 4.471500e-02 : f32
    %28 = vector.broadcast %cst_21 : f32 to vector<32x256xf32>
    %29 = arith.mulf %28, %25 : vector<32x256xf32>
    %30 = arith.mulf %29, %25 : vector<32x256xf32>
    %31 = arith.mulf %30, %25 : vector<32x256xf32>
    %32 = arith.addf %25, %31 : vector<32x256xf32>
    %cst_22 = arith.constant 0.797884583 : f32
    %33 = vector.broadcast %cst_22 : f32 to vector<32x256xf32>
    %34 = arith.mulf %33, %32 : vector<32x256xf32>
    %35 = math.tanh %34 : vector<32x256xf32>
    %cst_23 = arith.constant 1.000000e+00 : f32
    %36 = vector.broadcast %cst_23 : f32 to vector<32x256xf32>
    %37 = arith.addf %36, %35 : vector<32x256xf32>
    %38 = arith.mulf %27, %37 : vector<32x256xf32>
    %39 = arith.truncf %38 : vector<32x256xf32> to vector<32x256xbf16>
    %c128_24 = arith.constant 128 : index
    %c0_25 = arith.constant 0 : index
    %40 = vector.load %arg4[%c128_24, %c0_25] : memref<384x256xbf16, #tpu.memory_space<vmem>>, vector<256x256xbf16>
    %cst_26 = arith.constant dense<0.000000e+00> : vector<32x256xf32>
    %41 = tpu.matmul %39, %40, %cst_26 {dimension_numbers = #tpu.dot_dimension_numbers<[1], [0], [0], [1], [0, 0, 1, 1], [], []>} : vector<32x256xbf16>, vector<256x256xbf16>, vector<32x256xf32> -> vector<32x256xf32>
    %42 = vector.broadcast %3 : vector<1x256xf32> to vector<32x256xf32>
    %43 = arith.addf %41, %42 : vector<32x256xf32>
    %cst_27 = arith.constant 5.000000e-01 : f32
    %44 = vector.broadcast %cst_27 : f32 to vector<32x256xf32>
    %45 = arith.mulf %44, %43 : vector<32x256xf32>
    %cst_28 = arith.constant 4.471500e-02 : f32
    %46 = vector.broadcast %cst_28 : f32 to vector<32x256xf32>
    %47 = arith.mulf %46, %43 : vector<32x256xf32>
    %48 = arith.mulf %47, %43 : vector<32x256xf32>
    %49 = arith.mulf %48, %43 : vector<32x256xf32>
    %50 = arith.addf %43, %49 : vector<32x256xf32>
    %cst_29 = arith.constant 0.797884583 : f32
    %51 = vector.broadcast %cst_29 : f32 to vector<32x256xf32>
    %52 = arith.mulf %51, %50 : vector<32x256xf32>
    %53 = math.tanh %52 : vector<32x256xf32>
    %cst_30 = arith.constant 1.000000e+00 : f32
    %54 = vector.broadcast %cst_30 : f32 to vector<32x256xf32>
    %55 = arith.addf %54, %53 : vector<32x256xf32>
    %56 = arith.mulf %45, %55 : vector<32x256xf32>
    %57 = vector.broadcast %4 : vector<1x256xf32> to vector<32x256xf32>
    %58 = arith.mulf %56, %57 : vector<32x256xf32>
    %cst_31 = arith.constant dense<0.000000e+00> : vector<32xf32>
    %59 = vector.multi_reduction <add>, %58, %cst_31 [1] : vector<32x256xf32> to vector<32xf32>
    %60 = vector.shape_cast %59 : vector<32xf32> to vector<32x1xf32>
    %61 = vector.shape_cast %60 : vector<32x1xf32> to vector<32x1xf32>
    %62 = vector.broadcast %61 : vector<32x1xf32> to vector<32x128xf32>
    %63 = vector.broadcast %5 : vector<1x128xf32> to vector<32x128xf32>
    %64 = arith.addf %62, %63 : vector<32x128xf32>
    %cst_32 = arith.constant 0.000000e+00 : f32
    %65 = vector.broadcast %cst_32 : f32 to vector<32x128xf32>
    %66 = arith.maximumf %64, %65 : vector<32x128xf32>
    %67 = math.absf %64 : vector<32x128xf32>
    %cst_33 = arith.constant 0.000000e+00 : f32
    %68 = vector.broadcast %cst_33 : f32 to vector<32x128xf32>
    %69 = arith.subf %68, %67 : vector<32x128xf32>
    %70 = math.exp %69 : vector<32x128xf32>
    %71 = math.log1p %70 : vector<32x128xf32>
    %72 = arith.addf %66, %71 : vector<32x128xf32>
    %c0_34 = arith.constant 0 : index
    %c0_35 = arith.constant 0 : index
    %73 = vector.load %arg6[%c0_34, %c0_35] : memref<32x128xf32, #tpu.memory_space<vmem>>, vector<32x128xf32>
    tpu.vector_store %arg6[%c0_34, %c0_35], %72 {strides = array<i32>} : memref<32x128xf32, #tpu.memory_space<vmem>>, vector<32x128xf32>,
    return
  }
  func.func @transform_0(%arg0: i32) -> (i32, i32, i32) {
    %c0_i32 = arith.constant 0 : i32
    %c0_i32_0 = arith.constant 0 : i32
    %c0_i32_1 = arith.constant 0 : i32
    return %c0_i32, %arg0, %c0_i32_0 : i32, i32, i32
  }
  func.func @transform_1(%arg0: i32) -> (i32, i32) {
    %c0_i32 = arith.constant 0 : i32
    %c0_i32_0 = arith.constant 0 : i32
    return %arg0, %c0_i32 : i32, i32
  }
  func.func @transform_2(%arg0: i32) -> (i32, i32) {
    %c0_i32 = arith.constant 0 : i32
    %c0_i32_0 = arith.constant 0 : i32
    %c0_i32_1 = arith.constant 0 : i32
    return %c0_i32, %c0_i32_0 : i32, i32
  }
  func.func @transform_3(%arg0: i32) -> (i32, i32) {
    %c0_i32 = arith.constant 0 : i32
    %c0_i32_0 = arith.constant 0 : i32
    %c0_i32_1 = arith.constant 0 : i32
    return %c0_i32, %c0_i32_0 : i32, i32
  }
  func.func @transform_4(%arg0: i32) -> (i32, i32) {
    %c0_i32 = arith.constant 0 : i32
    %c0_i32_0 = arith.constant 0 : i32
    %c0_i32_1 = arith.constant 0 : i32
    return %c0_i32, %c0_i32_0 : i32, i32
  }
  func.func @transform_5(%arg0: i32) -> (i32, i32) {
    %c0_i32 = arith.constant 0 : i32
    %c0_i32_0 = arith.constant 0 : i32
    return %arg0, %c0_i32 : i32, i32
  }
}

</mosaic_0001>

<llo_original>
// kernel: tpu_custom_call.1
$region0: #{tpu_custom_call.1}
  #allocation0 [shape = 'u32[]', space=smem, size = 0x4, offset = 0x4, fixed_abs, tag = 'smem constant byte address 0x4 - core index']
  #allocation1 [shape = 'u32[144,128]{1,0:T(1,128)}', space=vmem, size = 0x12000, scoped, tag = 'internal scratch']
  %s0 = inlined_call_operand.hbm [shape: bf16[9,32,128], index: 0, kind: input, shape index: {}]
  %s1 = inlined_call_operand.hbm [shape: bf16[32,256], index: 1, kind: input, shape index: {}]
  %s2 = inlined_call_operand.hbm [shape: bf16[512,128], index: 2, kind: input, shape index: {}]
  %s3 = inlined_call_operand.hbm [shape: bf16[384,256], index: 3, kind: input, shape index: {}]
  %s4 = inlined_call_operand.vmem [shape: f32[1,1152], index: 4, kind: input, shape index: {}]
  %s5 = inlined_call_operand.hbm [shape: f32[32,128], index: 5, kind: output, shape index: {}]
  %s6 = sld [smem:[#allocation0]]
  $region46: #{tpu_custom_call.1} parent=0
    _
  %s8 = ssub.s32 1, %s6
  %s9 = scalar_select 0, %s8, %s6
  $region1: #{tpu_custom_call.1} parent=0
    #allocation2 [shape = 'u8[73728]{0}', space=vmem, size = 0x12000, scoped, tag = 'input window, operand 0, single buffered']
    #allocation3 [shape = 's32[1]{0}', space=sflag, size = 0x4, scoped, tag = 'scoped memory for tpu_custom_call.1']
    #allocation4 [shape = 's32[1]{0}', space=sflag, size = 0x4, scoped, tag = 'scoped memory for tpu_custom_call.1']
    #allocation5 [shape = 'u8[16384]{0}', space=vmem, size = 0x4000, scoped, tag = 'input window, operand 1, single buffered']
    #allocation6 [shape = 's32[1]{0}', space=sflag, size = 0x4, scoped, tag = 'scoped memory for tpu_custom_call.1']
    #allocation7 [shape = 'u8[131072]{0}', space=vmem, size = 0x20000, scoped, tag = 'input window, operand 2, single buffered']
    #allocation8 [shape = 'u8[196608]{0}', space=vmem, size = 0x30000, scoped, tag = 'input window, operand 3, single buffered']
    #allocation9 [shape = 's32[1]{0}', space=sflag, size = 0x4, scoped, tag = 'scoped memory for tpu_custom_call.1']
    #allocation10 [shape = 'u8[16384]{0}', space=vmem, size = 0x4000, scoped, tag = 'output window, operand 0, single buffered']
    %10 = vsyncpa [#allocation3], 0
    %11 = vsyncpa [#allocation6], 0
    %12 = vsyncpa [#allocation9], 0
    %13 = vsyncpa [#allocation4], 0
    // Predicated region
    $region2: #{tpu_custom_call.1} parent=1 // pred_check
      _
    $region3: #{tpu_custom_call.1} parent=1 // pred_check_branch
      %15 = sbr.rel (0) target = $region5
    $region4: #{tpu_custom_call.1} parent=1 // pred_region
      %s17 = ssub.s32 2304, 2304
      %18 = vsyncadd [#allocation3], %s17
      %s19 = sshll.u32 [#allocation2], 4
      %s20 = int_to_ptr.vmem [resolvable:$true] %s19
      %25 = dma.hbm_to_vmem [thread:$0]  %s0, 2304, %s20, [#allocation3], 64, 64, 4
    $region5: #{tpu_custom_call.1} parent=1 // pred_fallthru
      _
    // Predicated region
    $region6: #{tpu_custom_call.1} parent=1 // pred_check
      _
    $region7: #{tpu_custom_call.1} parent=1 // pred_check_branch
      %27 = sbr.rel (0) target = $region9
    $region8: #{tpu_custom_call.1} parent=1 // pred_region
      %s29 = ssub.s32 512, 512
      %30 = vsyncadd [#allocation6], %s29
      %s31 = sshll.u32 [#allocation5], 4
      %s32 = int_to_ptr.vmem [resolvable:$true] %s31
      %37 = dma.hbm_to_vmem [thread:$0]  %s1, 512, %s32, [#allocation6], 128, 128, 8
    $region9: #{tpu_custom_call.1} parent=1 // pred_fallthru
      _
    // Predicated region
    $region10: #{tpu_custom_call.1} parent=1 // pred_check
      _
    $region11: #{tpu_custom_call.1} parent=1 // pred_check_branch
      %39 = sbr.rel (0) target = $region13
    $region12: #{tpu_custom_call.1} parent=1 // pred_region
      %s41 = ssub.s32 4096, 4096
      %42 = vsyncadd [#allocation6], %s41
      %s43 = sshll.u32 [#allocation7], 4
      %s44 = int_to_ptr.vmem [resolvable:$true] %s43
      %49 = dma.hbm_to_vmem [thread:$0]  %s2, 4096, %s44, [#allocation6], 64, 64, 4
    $region13: #{tpu_custom_call.1} parent=1 // pred_fallthru
      _
    // Predicated region
    $region14: #{tpu_custom_call.1} parent=1 // pred_check
      _
    $region15: #{tpu_custom_call.1} parent=1 // pred_check_branch
      %51 = sbr.rel (0) target = $region17
    $region16: #{tpu_custom_call.1} parent=1 // pred_region
      %s53 = ssub.s32 6144, 6144
      %54 = vsyncadd [#allocation9], %s53
      %s55 = sshll.u32 [#allocation8], 4
      %s56 = int_to_ptr.vmem [resolvable:$true] %s55
      %61 = dma.hbm_to_vmem [thread:$0]  %s3, 6144, %s56, [#allocation9], 128, 128, 8
    $region17: #{tpu_custom_call.1} parent=1 // pred_fallthru
      _
    // Predicated region
    $region18: #{tpu_custom_call.1} parent=1 // pred_check
      _
    $region19: #{tpu_custom_call.1} parent=1 // pred_check_branch
      %63 = sbr.rel (0) target = $region21
    $region20: #{tpu_custom_call.1} parent=1 // pred_region
      _
    $region21: #{tpu_custom_call.1} parent=1 // pred_fallthru
      _
    // Predicated region
    $region22: #{tpu_custom_call.1} parent=1 // pred_check
      _
    $region23: #{tpu_custom_call.1} parent=1 // pred_check_branch
      %65 = sbr.rel (0) target = $region25
    $region24: #{tpu_custom_call.1} parent=1 // pred_region
      %66 = dma.done [#allocation3], 2304
    $region25: #{tpu_custom_call.1} parent=1 // pred_fallthru
      _
    // Predicated region
    $region26: #{tpu_custom_call.1} parent=1 // pred_check
      _
    $region27: #{tpu_custom_call.1} parent=1 // pred_check_branch
      %68 = sbr.rel (0) target = $region29
    $region28: #{tpu_custom_call.1} parent=1 // pred_region
      %69 = dma.done [#allocation6], 512
    $region29: #{tpu_custom_call.1} parent=1 // pred_fallthru
      _
    // Predicated region
    $region30: #{tpu_custom_call.1} parent=1 // pred_check
      _
    $region31: #{tpu_custom_call.1} parent=1 // pred_check_branch
      %71 = sbr.rel (0) target = $region33
    $region32: #{tpu_custom_call.1} parent=1 // pred_region
      %72 = dma.done [#allocation6], 4096
    $region33: #{tpu_custom_call.1} parent=1 // pred_fallthru
      _
    // Predicated region
    $region34: #{tpu_custom_call.1} parent=1 // pred_check
      _
    $region35: #{tpu_custom_call.1} parent=1 // pred_check_branch
      %74 = sbr.rel (0) target = $region37
    $region36: #{tpu_custom_call.1} parent=1 // pred_region
      %75 = dma.done [#allocation9], 6144
    $region37: #{tpu_custom_call.1} parent=1 // pred_fallthru
      _
    %v77 = vld [vmem:[%s4] sm:$0x1]
    %v78 = vld [vmem:[%s4 + $0x1] sm:$0x1]
    %v79 = vld [vmem:[%s4 + $0x2] sm:$0x3]
    %v80 = vld [vmem:[%s4 + $0x4] sm:$0x3]
    %v81 = vld [vmem:[%s4 + $0x6] sm:$0x3]
    %v82 = vld [vmem:[%s4 + $0x8] sm:$0x1]
    %v83 = vld [vmem:[#allocation2] sm:$0xf]
    %v84 = vld [vmem:[#allocation2 + $0x4] sm:$0xf]
    %v85 = vld [vmem:[#allocation2 + $0x8] sm:$0xf]
    %v86 = vld [vmem:[#allocation2 + $0xc] sm:$0xf]
    %v87 = vld [vmem:[#allocation2 + $0x10] sm:$0xf]
    %v88 = vld [vmem:[#allocation2 + $0x14] sm:$0xf]
    %v89 = vld [vmem:[#allocation2 + $0x18] sm:$0xf]
    %v90 = vld [vmem:[#allocation2 + $0x1c] sm:$0xf]
    %v91 = vld [vmem:[#allocation2 + $0x20] sm:$0xf]
    %v92 = vld [vmem:[#allocation2 + $0x24] sm:$0xf]
    %v93 = vld [vmem:[#allocation2 + $0x28] sm:$0xf]
    %v94 = vld [vmem:[#allocation2 + $0x2c] sm:$0xf]
    %v95 = vld [vmem:[#allocation2 + $0x30] sm:$0xf]
    %v96 = vld [vmem:[#allocation2 + $0x34] sm:$0xf]
    %v97 = vld [vmem:[#allocation2 + $0x38] sm:$0xf]
    %v98 = vld [vmem:[#allocation2 + $0x3c] sm:$0xf]
    %v99 = vld [vmem:[#allocation2 + $0x40] sm:$0xf]
    %v100 = vld [vmem:[#allocation2 + $0x44] sm:$0xf]
    %v101 = vld [vmem:[#allocation2 + $0x48] sm:$0xf]
    %v102 = vld [vmem:[#allocation2 + $0x4c] sm:$0xf]
    %v103 = vld [vmem:[#allocation2 + $0x50] sm:$0xf]
    %v104 = vld [vmem:[#allocation2 + $0x54] sm:$0xf]
    %v105 = vld [vmem:[#allocation2 + $0x58] sm:$0xf]
    %v106 = vld [vmem:[#allocation2 + $0x5c] sm:$0xf]
    %v107 = vld [vmem:[#allocation2 + $0x60] sm:$0xf]
    %v108 = vld [vmem:[#allocation2 + $0x64] sm:$0xf]
    %v109 = vld [vmem:[#allocation2 + $0x68] sm:$0xf]
    %v110 = vld [vmem:[#allocation2 + $0x6c] sm:$0xf]
    %v111 = vld [vmem:[#allocation2 + $0x70] sm:$0xf]
    %v112 = vld [vmem:[#allocation2 + $0x74] sm:$0xf]
    %v113 = vld [vmem:[#allocation2 + $0x78] sm:$0xf]
    %v114 = vld [vmem:[#allocation2 + $0x7c] sm:$0xf]
    %v115 = vld [vmem:[#allocation2 + $0x80] sm:$0xf]
    %v116 = vld [vmem:[#allocation2 + $0x84] sm:$0xf]
    %v117 = vld [vmem:[#allocation2 + $0x88] sm:$0xf]
    %v118 = vld [vmem:[#allocation2 + $0x8c] sm:$0xf]
    %v119 = vunpack.c.l.bf16 %v83
    %v120 = vunpack.c.l.bf16 %v84
    %v121 = vunpack.c.l.bf16 %v85
    %v122 = vunpack.c.l.bf16 %v86
    %v123 = vunpack.c.l.bf16 %v87
    %v124 = vunpack.c.l.bf16 %v88
    %v125 = vunpack.c.l.bf16 %v89
    %v126 = vunpack.c.l.bf16 %v90
    %v127 = vunpack.c.l.bf16 %v91
    %v128 = vunpack.c.l.bf16 %v92
    %v129 = vunpack.c.l.bf16 %v93
    %v130 = vunpack.c.l.bf16 %v94
    %v131 = vunpack.c.l.bf16 %v95
    %v132 = vunpack.c.l.bf16 %v96
    %v133 = vunpack.c.l.bf16 %v97
    %v134 = vunpack.c.l.bf16 %v98
    %v135 = vunpack.c.l.bf16 %v99
    %v136 = vunpack.c.l.bf16 %v100
    %v137 = vunpack.c.l.bf16 %v101
    %v138 = vunpack.c.l.bf16 %v102
    %v139 = vunpack.c.l.bf16 %v103
    %v140 = vunpack.c.l.bf16 %v104
    %v141 = vunpack.c.l.bf16 %v105
    %v142 = vunpack.c.l.bf16 %v106
    %v143 = vunpack.c.l.bf16 %v107
    %v144 = vunpack.c.l.bf16 %v108
    %v145 = vunpack.c.l.bf16 %v109
    %v146 = vunpack.c.l.bf16 %v110
    %v147 = vunpack.c.l.bf16 %v111
    %v148 = vunpack.c.l.bf16 %v112
    %v149 = vunpack.c.l.bf16 %v113
    %v150 = vunpack.c.l.bf16 %v114
    %v151 = vunpack.c.l.bf16 %v115
    %v152 = vunpack.c.l.bf16 %v116
    %v153 = vunpack.c.l.bf16 %v117
    %v154 = vunpack.c.l.bf16 %v118
    %v155 = vadd.f32 %v119, %v123
    %v156 = vadd.f32 %v155, %v127
    %v157 = vadd.f32 %v156, %v131
    %v158 = vadd.f32 %v157, %v135
    %v159 = vadd.f32 %v158, %v139
    %v160 = vadd.f32 %v159, %v143
    %v161 = vadd.f32 %v160, %v147
    %v162 = vadd.f32 %v161, %v151
    %v163 = vadd.f32 %v120, %v124
    %v164 = vadd.f32 %v163, %v128
    %v165 = vadd.f32 %v164, %v132
    %v166 = vadd.f32 %v165, %v136
    %v167 = vadd.f32 %v166, %v140
    %v168 = vadd.f32 %v167, %v144
    %v169 = vadd.f32 %v168, %v148
    %v170 = vadd.f32 %v169, %v152
    %v171 = vadd.f32 %v121, %v125
    %v172 = vadd.f32 %v171, %v129
    %v173 = vadd.f32 %v172, %v133
    %v174 = vadd.f32 %v173, %v137
    %v175 = vadd.f32 %v174, %v141
    %v176 = vadd.f32 %v175, %v145
    %v177 = vadd.f32 %v176, %v149
    %v178 = vadd.f32 %v177, %v153
    %v179 = vadd.f32 %v122, %v126
    %v180 = vadd.f32 %v179, %v130
    %v181 = vadd.f32 %v180, %v134
    %v182 = vadd.f32 %v181, %v138
    %v183 = vadd.f32 %v182, %v142
    %v184 = vadd.f32 %v183, %v146
    %v185 = vadd.f32 %v184, %v150
    %v186 = vadd.f32 %v185, %v154
    %v187 = vld [vmem:[#allocation5] sm:$0xff]
    %v188 = vld [vmem:[#allocation5 + $0x8] sm:$0xff]
    %v189 = vld [vmem:[#allocation5 + $0x10] sm:$0xff]
    %v190 = vld [vmem:[#allocation5 + $0x18] sm:$0xff]
    %v191 = vld [vmem:[#allocation7] sm:$0xf]
    %v192 = vld [vmem:[#allocation7 + $0x4] sm:$0xf]
    %v193 = vld [vmem:[#allocation7 + $0x8] sm:$0xf]
    %v194 = vld [vmem:[#allocation7 + $0xc] sm:$0xf]
    %v195 = vld [vmem:[#allocation7 + $0x10] sm:$0xf]
    %v196 = vld [vmem:[#allocation7 + $0x14] sm:$0xf]
    %v197 = vld [vmem:[#allocation7 + $0x18] sm:$0xf]
    %v198 = vld [vmem:[#allocation7 + $0x1c] sm:$0xf]
    %v199 = vld [vmem:[#allocation7 + $0x20] sm:$0xf]
    %v200 = vld [vmem:[#allocation7 + $0x24] sm:$0xf]
    %v201 = vld [vmem:[#allocation7 + $0x28] sm:$0xf]
    %v202 = vld [vmem:[#allocation7 + $0x2c] sm:$0xf]
    %v203 = vld [vmem:[#allocation7 + $0x30] sm:$0xf]
    %v204 = vld [vmem:[#allocation7 + $0x34] sm:$0xf]
    %v205 = vld [vmem:[#allocation7 + $0x38] sm:$0xf]
    %v206 = vld [vmem:[#allocation7 + $0x3c] sm:$0xf]
    %v207 = vld [vmem:[#allocation7 + $0x40] sm:$0xf]
    %v208 = vld [vmem:[#allocation7 + $0x44] sm:$0xf]
    %v209 = vld [vmem:[#allocation7 + $0x48] sm:$0xf]
    %v210 = vld [vmem:[#allocation7 + $0x4c] sm:$0xf]
    %v211 = vld [vmem:[#allocation7 + $0x50] sm:$0xf]
    %v212 = vld [vmem:[#allocation7 + $0x54] sm:$0xf]
    %v213 = vld [vmem:[#allocation7 + $0x58] sm:$0xf]
    %v214 = vld [vmem:[#allocation7 + $0x5c] sm:$0xf]
    %v215 = vld [vmem:[#allocation7 + $0x60] sm:$0xf]
    %v216 = vld [vmem:[#allocation7 + $0x64] sm:$0xf]
    %v217 = vld [vmem:[#allocation7 + $0x68] sm:$0xf]
    %v218 = vld [vmem:[#allocation7 + $0x6c] sm:$0xf]
    %v219 = vld [vmem:[#allocation7 + $0x70] sm:$0xf]
    %v220 = vld [vmem:[#allocation7 + $0x74] sm:$0xf]
    %v221 = vld [vmem:[#allocation7 + $0x78] sm:$0xf]
    %v222 = vld [vmem:[#allocation7 + $0x7c] sm:$0xf]
    %v224 = vlaneseq
    %v225 = vshrl.u32 %v224, 7
    %v226 = vsub.s32 0, %v225
    %v227 = vrot.slane %v77, %v226
    %v233 = vunpack.c.l.b16 %v187
    %v234 = vunpack.c.h.b16 %v187
    %v235 = vunpack.c.l.b16 %v188
    %v236 = vunpack.c.h.b16 %v188
    %v237 = vunpack.c.l.b16 %v189
    %v238 = vunpack.c.h.b16 %v189
    %v239 = vunpack.c.l.b16 %v190
    %v240 = vunpack.c.h.b16 %v190
    %v241 = vpack.c.b16 %v235, %v233
    %v242 = vpack.c.b16 %v236, %v234
    %v243 = vpack.c.b16 %v239, %v237
    %v244 = vpack.c.b16 %v240, %v238
    %v281 = vunpack.c.l.b16 %v191
    %v282 = vunpack.c.l.b16 %v192
    %v283 = vunpack.c.l.b16 %v193
    %v284 = vunpack.c.l.b16 %v194
    %v285 = vunpack.c.l.b16 %v195
    %v286 = vunpack.c.l.b16 %v196
    %v287 = vunpack.c.l.b16 %v197
    %v288 = vunpack.c.l.b16 %v198
    %v289 = vunpack.c.l.b16 %v199
    %v290 = vunpack.c.l.b16 %v200
    %v291 = vunpack.c.l.b16 %v201
    %v292 = vunpack.c.l.b16 %v202
    %v293 = vunpack.c.l.b16 %v203
    %v294 = vunpack.c.l.b16 %v204
    %v295 = vunpack.c.l.b16 %v205
    %v296 = vunpack.c.l.b16 %v206
    %v297 = vunpack.c.l.b16 %v207
    %v298 = vunpack.c.l.b16 %v208
    %v299 = vunpack.c.l.b16 %v209
    %v300 = vunpack.c.l.b16 %v210
    %v301 = vunpack.c.l.b16 %v211
    %v302 = vunpack.c.l.b16 %v212
    %v303 = vunpack.c.l.b16 %v213
    %v304 = vunpack.c.l.b16 %v214
    %v305 = vunpack.c.l.b16 %v215
    %v306 = vunpack.c.l.b16 %v216
    %v307 = vunpack.c.l.b16 %v217
    %v308 = vunpack.c.l.b16 %v218
    %v309 = vunpack.c.l.b16 %v219
    %v310 = vunpack.c.l.b16 %v220
    %v311 = vunpack.c.l.b16 %v221
    %v312 = vunpack.c.l.b16 %v222
    %v313 = vpack.c.b16 %v282, %v281
    %v314 = vpack.c.b16 %v284, %v283
    %v315 = vpack.c.b16 %v286, %v285
    %v316 = vpack.c.b16 %v288, %v287
    %v317 = vpack.c.b16 %v290, %v289
    %v318 = vpack.c.b16 %v292, %v291
    %v319 = vpack.c.b16 %v294, %v293
    %v320 = vpack.c.b16 %v296, %v295
    %v321 = vpack.c.b16 %v298, %v297
    %v322 = vpack.c.b16 %v300, %v299
    %v323 = vpack.c.b16 %v302, %v301
    %v324 = vpack.c.b16 %v304, %v303
    %v325 = vpack.c.b16 %v306, %v305
    %v326 = vpack.c.b16 %v308, %v307
    %v327 = vpack.c.b16 %v310, %v309
    %v328 = vpack.c.b16 %v312, %v311
    %345 = vmatprep.subr.bf16.mxu0 0
    %346 = vmatpush1.bf16.msra.mxu0 %v313
    %347 = vmatprep.subr.bf16.mxu0 0
    %348 = vmatpush1.bf16.msra.mxu0 %v314
    %349 = vmatprep.subr.bf16.mxu0 0
    %350 = vmatpush1.bf16.msra.mxu0 %v315
    %351 = vmatprep.subr.bf16.mxu0 0
    %352 = vmatpush1.bf16.msra.mxu0 %v316
    %353 = vmatprep.subr.bf16.mxu0 0
    %354 = vmatpush1.bf16.msra.mxu0 %v317
    %355 = vmatprep.subr.bf16.mxu0 0
    %356 = vmatpush1.bf16.msra.mxu0 %v318
    %357 = vmatprep.subr.bf16.mxu0 0
    %358 = vmatpush1.bf16.msra.mxu0 %v319
    %359 = vmatprep.subr.bf16.mxu0 0
    %360 = vmatpush1.bf16.msra.mxu0 %v320
    %361 = vmatprep.subr.bf16.mxu0 0
    %362 = vmatpush1.bf16.msra.mxu0 %v321
    %363 = vmatprep.subr.bf16.mxu0 0
    %364 = vmatpush1.bf16.msra.mxu0 %v322
    %365 = vmatprep.subr.bf16.mxu0 0
    %366 = vmatpush1.bf16.msra.mxu0 %v323
    %367 = vmatprep.subr.bf16.mxu0 0
    %368 = vmatpush1.bf16.msra.mxu0 %v324
    %369 = vmatprep.subr.bf16.mxu0 0
    %370 = vmatpush1.bf16.msra.mxu0 %v325
    %371 = vmatprep.subr.bf16.mxu0 0
    %372 = vmatpush1.bf16.msra.mxu0 %v326
    %373 = vmatprep.subr.bf16.mxu0 0
    %374 = vmatpush1.bf16.msra.mxu0 %v327
    %375 = vmatprep.subr.bf16.mxu0 0
    %376 = vmatpush1.bf16.msra.mxu0 %v328
    %377 = vmatprep.mubr.bf16.mxu0 %v242
    %378 = vmatmul.mubr.bf16.gmra.mrb[0].mxu0 %v241
    %v379 = vpop.f32.mrb[0].mxu0
    %v380 = vadd.f32 %v227, %v379
    %v381 = vpop.f32.mrb[0].mxu0
    %v382 = vpop.f32.mrb[0].mxu0
    %v383 = vadd.f32 %v227, %v382
    %v384 = vpop.f32.mrb[0].mxu0
    %385 = vmatprep.mubr.bf16.mxu0 %v244
    %386 = vmatmul.mubr.bf16.gmra.mrb[0].mxu0 %v243
    %v387 = vpop.f32.mrb[0].mxu0
    %v388 = vadd.f32 %v227, %v387
    %v389 = vpop.f32.mrb[0].mxu0
    %v390 = vpop.f32.mrb[0].mxu0
    %v391 = vadd.f32 %v227, %v390
    %v392 = vpop.f32.mrb[0].mxu0
    %393 = vdwg.mxu0
    %v394 = vpack.c.bf16 %v170, %v162
    %v395 = vpack.c.bf16 %v186, %v178
    %v396 = vpack.c.bf16 %v383, %v380
    %v397 = vpack.c.bf16 %v391, %v388
    %v398 = vld [vmem:[#allocation7 + $0x80] sm:$0xf]
    %v399 = vld [vmem:[#allocation7 + $0x84] sm:$0xf]
    %v400 = vld [vmem:[#allocation7 + $0x88] sm:$0xf]
    %v401 = vld [vmem:[#allocation7 + $0x8c] sm:$0xf]
    %v402 = vld [vmem:[#allocation7 + $0x90] sm:$0xf]
    %v403 = vld [vmem:[#allocation7 + $0x94] sm:$0xf]
    %v404 = vld [vmem:[#allocation7 + $0x98] sm:$0xf]
    %v405 = vld [vmem:[#allocation7 + $0x9c] sm:$0xf]
    %v406 = vld [vmem:[#allocation7 + $0xa0] sm:$0xf]
    %v407 = vld [vmem:[#allocation7 + $0xa4] sm:$0xf]
    %v408 = vld [vmem:[#allocation7 + $0xa8] sm:$0xf]
    %v409 = vld [vmem:[#allocation7 + $0xac] sm:$0xf]
    %v410 = vld [vmem:[#allocation7 + $0xb0] sm:$0xf]
    %v411 = vld [vmem:[#allocation7 + $0xb4] sm:$0xf]
    %v412 = vld [vmem:[#allocation7 + $0xb8] sm:$0xf]
    %v413 = vld [vmem:[#allocation7 + $0xbc] sm:$0xf]
    %v414 = vld [vmem:[#allocation7 + $0xc0] sm:$0xf]
    %v415 = vld [vmem:[#allocation7 + $0xc4] sm:$0xf]
    %v416 = vld [vmem:[#allocation7 + $0xc8] sm:$0xf]
    %v417 = vld [vmem:[#allocation7 + $0xcc] sm:$0xf]
    %v418 = vld [vmem:[#allocation7 + $0xd0] sm:$0xf]
    %v419 = vld [vmem:[#allocation7 + $0xd4] sm:$0xf]
    %v420 = vld [vmem:[#allocation7 + $0xd8] sm:$0xf]
    %v421 = vld [vmem:[#allocation7 + $0xdc] sm:$0xf]
    %v422 = vld [vmem:[#allocation7 + $0xe0] sm:$0xf]
    %v423 = vld [vmem:[#allocation7 + $0xe4] sm:$0xf]
    %v424 = vld [vmem:[#allocation7 + $0xe8] sm:$0xf]
    %v425 = vld [vmem:[#allocation7 + $0xec] sm:$0xf]
    %v426 = vld [vmem:[#allocation7 + $0xf0] sm:$0xf]
    %v427 = vld [vmem:[#allocation7 + $0xf4] sm:$0xf]
    %v428 = vld [vmem:[#allocation7 + $0xf8] sm:$0xf]
    %v429 = vld [vmem:[#allocation7 + $0xfc] sm:$0xf]
    %v431 = vlaneseq
    %v432 = vshrl.u32 %v431, 7
    %v433 = vsub.s32 0, %v432
    %v434 = vrot.slane %v78, %v433
    %v468 = vunpack.c.l.b16 %v398
    %v469 = vunpack.c.l.b16 %v399
    %v470 = vunpack.c.l.b16 %v400
    %v471 = vunpack.c.l.b16 %v401
    %v472 = vunpack.c.l.b16 %v402
    %v473 = vunpack.c.l.b16 %v403
    %v474 = vunpack.c.l.b16 %v404
    %v475 = vunpack.c.l.b16 %v405
    %v476 = vunpack.c.l.b16 %v406
    %v477 = vunpack.c.l.b16 %v407
    %v478 = vunpack.c.l.b16 %v408
    %v479 = vunpack.c.l.b16 %v409
    %v480 = vunpack.c.l.b16 %v410
    %v481 = vunpack.c.l.b16 %v411
    %v482 = vunpack.c.l.b16 %v412
    %v483 = vunpack.c.l.b16 %v413
    %v484 = vunpack.c.l.b16 %v414
    %v485 = vunpack.c.l.b16 %v415
    %v486 = vunpack.c.l.b16 %v416
    %v487 = vunpack.c.l.b16 %v417
    %v488 = vunpack.c.l.b16 %v418
    %v489 = vunpack.c.l.b16 %v419
    %v490 = vunpack.c.l.b16 %v420
    %v491 = vunpack.c.l.b16 %v421
    %v492 = vunpack.c.l.b16 %v422
    %v493 = vunpack.c.l.b16 %v423
    %v494 = vunpack.c.l.b16 %v424
    %v495 = vunpack.c.l.b16 %v425
    %v496 = vunpack.c.l.b16 %v426
    %v497 = vunpack.c.l.b16 %v427
    %v498 = vunpack.c.l.b16 %v428
    %v499 = vunpack.c.l.b16 %v429
    %v500 = vpack.c.b16 %v469, %v468
    %v501 = vpack.c.b16 %v471, %v470
    %v502 = vpack.c.b16 %v473, %v472
    %v503 = vpack.c.b16 %v475, %v474
    %v504 = vpack.c.b16 %v477, %v476
    %v505 = vpack.c.b16 %v479, %v478
    %v506 = vpack.c.b16 %v481, %v480
    %v507 = vpack.c.b16 %v483, %v482
    %v508 = vpack.c.b16 %v485, %v484
    %v509 = vpack.c.b16 %v487, %v486
    %v510 = vpack.c.b16 %v489, %v488
    %v511 = vpack.c.b16 %v491, %v490
    %v512 = vpack.c.b16 %v493, %v492
    %v513 = vpack.c.b16 %v495, %v494
    %v514 = vpack.c.b16 %v497, %v496
    %v515 = vpack.c.b16 %v499, %v498
    %532 = vmatprep.subr.bf16.mxu0 0
    %533 = vmatpush1.bf16.msra.mxu0 %v500
    %534 = vmatprep.subr.bf16.mxu0 0
    %535 = vmatpush1.bf16.msra.mxu0 %v501
    %536 = vmatprep.subr.bf16.mxu0 0
    %537 = vmatpush1.bf16.msra.mxu0 %v502
    %538 = vmatprep.subr.bf16.mxu0 0
    %539 = vmatpush1.bf16.msra.mxu0 %v503
    %540 = vmatprep.subr.bf16.mxu0 0
    %541 = vmatpush1.bf16.msra.mxu0 %v504
    %542 = vmatprep.subr.bf16.mxu0 0
    %543 = vmatpush1.bf16.msra.mxu0 %v505
    %544 = vmatprep.subr.bf16.mxu0 0
    %545 = vmatpush1.bf16.msra.mxu0 %v506
    %546 = vmatprep.subr.bf16.mxu0 0
    %547 = vmatpush1.bf16.msra.mxu0 %v507
    %548 = vmatprep.subr.bf16.mxu0 0
    %549 = vmatpush1.bf16.msra.mxu0 %v508
    %550 = vmatprep.subr.bf16.mxu0 0
    %551 = vmatpush1.bf16.msra.mxu0 %v509
    %552 = vmatprep.subr.bf16.mxu0 0
    %553 = vmatpush1.bf16.msra.mxu0 %v510
    %554 = vmatprep.subr.bf16.mxu0 0
    %555 = vmatpush1.bf16.msra.mxu0 %v511
    %556 = vmatprep.subr.bf16.mxu0 0
    %557 = vmatpush1.bf16.msra.mxu0 %v512
    %558 = vmatprep.subr.bf16.mxu0 0
    %559 = vmatpush1.bf16.msra.mxu0 %v513
    %560 = vmatprep.subr.bf16.mxu0 0
    %561 = vmatpush1.bf16.msra.mxu0 %v514
    %562 = vmatprep.subr.bf16.mxu0 0
    %563 = vmatpush1.bf16.msra.mxu0 %v515
    %564 = vmatprep.mubr.bf16.mxu0 %v396
    %565 = vmatmul.mubr.bf16.gmra.mrb[0].mxu0 %v394
    %v566 = vpop.f32.mrb[0].mxu0
    %v567 = vadd.f32 %v434, %v566
    %v568 = vpop.f32.mrb[0].mxu0
    %v569 = vpop.f32.mrb[0].mxu0
    %v570 = vadd.f32 %v434, %v569
    %v571 = vpop.f32.mrb[0].mxu0
    %572 = vmatprep.mubr.bf16.mxu0 %v397
    %573 = vmatmul.mubr.bf16.gmra.mrb[0].mxu0 %v395
    %v574 = vpop.f32.mrb[0].mxu0
    %v575 = vadd.f32 %v434, %v574
    %v576 = vpop.f32.mrb[0].mxu0
    %v577 = vpop.f32.mrb[0].mxu0
    %v578 = vadd.f32 %v434, %v577
    %v579 = vpop.f32.mrb[0].mxu0
    %580 = vdwg.mxu0
    %v581 = vpack.c.bf16 %v570, %v567
    %v582 = vpack.c.bf16 %v578, %v575
    %v583 = vld [vmem:[#allocation8] sm:$0xff]
    %v584 = vld [vmem:[#allocation8 + $0x8] sm:$0xff]
    %v585 = vld [vmem:[#allocation8 + $0x10] sm:$0xff]
    %v586 = vld [vmem:[#allocation8 + $0x18] sm:$0xff]
    %v587 = vld [vmem:[#allocation8 + $0x20] sm:$0xff]
    %v588 = vld [vmem:[#allocation8 + $0x28] sm:$0xff]
    %v589 = vld [vmem:[#allocation8 + $0x30] sm:$0xff]
    %v590 = vld [vmem:[#allocation8 + $0x38] sm:$0xff]
    %v591 = vld [vmem:[#allocation8 + $0x40] sm:$0xff]
    %v592 = vld [vmem:[#allocation8 + $0x48] sm:$0xff]
    %v593 = vld [vmem:[#allocation8 + $0x50] sm:$0xff]
    %v594 = vld [vmem:[#allocation8 + $0x58] sm:$0xff]
    %v595 = vld [vmem:[#allocation8 + $0x60] sm:$0xff]
    %v596 = vld [vmem:[#allocation8 + $0x68] sm:$0xff]
    %v597 = vld [vmem:[#allocation8 + $0x70] sm:$0xff]
    %v598 = vld [vmem:[#allocation8 + $0x78] sm:$0xff]
    %v600 = vlaneseq
    %v601 = vshrl.u32 %v600, 7
    %v602 = vsub.s32 0, %v601
    %v603 = vrot.slane %v79, %v602
    %v604 = vlaneseq
    %v605 = vshrl.u32 %v604, 7
    %v606 = vsub.s32 1, %v605
    %v607 = vrot.slane %v79, %v606
    %v626 = vunpack.c.l.b16 %v583
    %v627 = vunpack.c.h.b16 %v583
    %v628 = vunpack.c.l.b16 %v584
    %v629 = vunpack.c.h.b16 %v584
    %v630 = vunpack.c.l.b16 %v585
    %v631 = vunpack.c.h.b16 %v585
    %v632 = vunpack.c.l.b16 %v586
    %v633 = vunpack.c.h.b16 %v586
    %v634 = vunpack.c.l.b16 %v587
    %v635 = vunpack.c.h.b16 %v587
    %v636 = vunpack.c.l.b16 %v588
    %v637 = vunpack.c.h.b16 %v588
    %v638 = vunpack.c.l.b16 %v589
    %v639 = vunpack.c.h.b16 %v589
    %v640 = vunpack.c.l.b16 %v590
    %v641 = vunpack.c.h.b16 %v590
    %v642 = vunpack.c.l.b16 %v591
    %v643 = vunpack.c.h.b16 %v591
    %v644 = vunpack.c.l.b16 %v592
    %v645 = vunpack.c.h.b16 %v592
    %v646 = vunpack.c.l.b16 %v593
    %v647 = vunpack.c.h.b16 %v593
    %v648 = vunpack.c.l.b16 %v594
    %v649 = vunpack.c.h.b16 %v594
    %v650 = vunpack.c.l.b16 %v595
    %v651 = vunpack.c.h.b16 %v595
    %v652 = vunpack.c.l.b16 %v596
    %v653 = vunpack.c.h.b16 %v596
    %v654 = vunpack.c.l.b16 %v597
    %v655 = vunpack.c.h.b16 %v597
    %v656 = vunpack.c.l.b16 %v598
    %v657 = vunpack.c.h.b16 %v598
    %v658 = vpack.c.b16 %v628, %v626
    %v659 = vpack.c.b16 %v629, %v627
    %v660 = vpack.c.b16 %v632, %v630
    %v661 = vpack.c.b16 %v633, %v631
    %v662 = vpack.c.b16 %v636, %v634
    %v663 = vpack.c.b16 %v637, %v635
    %v664 = vpack.c.b16 %v640, %v638
    %v665 = vpack.c.b16 %v641, %v639
    %v666 = vpack.c.b16 %v644, %v642
    %v667 = vpack.c.b16 %v645, %v643
    %v668 = vpack.c.b16 %v648, %v646
    %v669 = vpack.c.b16 %v649, %v647
    %v670 = vpack.c.b16 %v652, %v650
    %v671 = vpack.c.b16 %v653, %v651
    %v672 = vpack.c.b16 %v656, %v654
    %v673 = vpack.c.b16 %v657, %v655
    %690 = vmatprep.subr.bf16.mxu0 %v659
    %691 = vmatpush1.bf16.msra.mxu0 %v658
    %692 = vmatprep.subr.bf16.mxu0 %v661
    %693 = vmatpush1.bf16.msra.mxu0 %v660
    %694 = vmatprep.subr.bf16.mxu0 %v663
    %695 = vmatpush1.bf16.msra.mxu0 %v662
    %696 = vmatprep.subr.bf16.mxu0 %v665
    %697 = vmatpush1.bf16.msra.mxu0 %v664
    %698 = vmatprep.subr.bf16.mxu0 %v667
    %699 = vmatpush1.bf16.msra.mxu0 %v666
    %700 = vmatprep.subr.bf16.mxu0 %v669
    %701 = vmatpush1.bf16.msra.mxu0 %v668
    %702 = vmatprep.subr.bf16.mxu0 %v671
    %703 = vmatpush1.bf16.msra.mxu0 %v670
    %704 = vmatprep.subr.bf16.mxu0 %v673
    %705 = vmatpush1.bf16.msra.mxu0 %v672
    %706 = vmatprep.subr.bf16.mxu0 0
    %707 = vmatpush1.bf16.msra.mxu0 0
    %708 = vmatprep.subr.bf16.mxu0 0
    %709 = vmatpush1.bf16.msra.mxu0 0
    %710 = vmatprep.subr.bf16.mxu0 0
    %711 = vmatpush1.bf16.msra.mxu0 0
    %712 = vmatprep.subr.bf16.mxu0 0
    %713 = vmatpush1.bf16.msra.mxu0 0
    %714 = vmatprep.subr.bf16.mxu0 0
    %715 = vmatpush1.bf16.msra.mxu0 0
    %716 = vmatprep.subr.bf16.mxu0 0
    %717 = vmatpush1.bf16.msra.mxu0 0
    %718 = vmatprep.subr.bf16.mxu0 0
    %719 = vmatpush1.bf16.msra.mxu0 0
    %720 = vmatprep.subr.bf16.mxu0 0
    %721 = vmatpush1.bf16.msra.mxu0 0
    %722 = vmatprep.mubr.bf16.mxu0 0
    %723 = vmatmul.mubr.bf16.gmra.mrb[0].mxu0 %v581
    %v724 = vpop.f32.mrb[0].mxu0
    %v725 = vadd.f32 %v603, %v724
    %v726 = vpop.f32.mrb[0].mxu0
    %v727 = vadd.f32 %v607, %v726
    %v728 = vpop.f32.mrb[0].mxu0
    %v729 = vadd.f32 %v603, %v728
    %v730 = vpop.f32.mrb[0].mxu0
    %v731 = vadd.f32 %v607, %v730
    %732 = vmatprep.mubr.bf16.mxu0 0
    %733 = vmatmul.mubr.bf16.gmra.mrb[0].mxu0 %v582
    %v734 = vpop.f32.mrb[0].mxu0
    %v735 = vadd.f32 %v603, %v734
    %v736 = vpop.f32.mrb[0].mxu0
    %v737 = vadd.f32 %v607, %v736
    %v738 = vpop.f32.mrb[0].mxu0
    %v739 = vadd.f32 %v603, %v738
    %v740 = vpop.f32.mrb[0].mxu0
    %v741 = vadd.f32 %v607, %v740
    %742 = vdwg.mxu0
    %v743 = vmul.f32 %v725, 0.5
    %v744 = vmul.f32 %v727, 0.5
    %v745 = vmul.f32 %v729, 0.5
    %v746 = vmul.f32 %v731, 0.5
    %v747 = vmul.f32 %v735, 0.5
    %v748 = vmul.f32 %v737, 0.5
    %v749 = vmul.f32 %v739, 0.5
    %v750 = vmul.f32 %v741, 0.5
    %v751 = vmul.f32 %v725, 0.044715
    %v752 = vmul.f32 %v727, 0.044715
    %v753 = vmul.f32 %v729, 0.044715
    %v754 = vmul.f32 %v731, 0.044715
    %v755 = vmul.f32 %v735, 0.044715
    %v756 = vmul.f32 %v737, 0.044715
    %v757 = vmul.f32 %v739, 0.044715
    %v758 = vmul.f32 %v741, 0.044715
    %v759 = vmul.f32 %v751, %v725
    %v760 = vmul.f32 %v752, %v727
    %v761 = vmul.f32 %v753, %v729
    %v762 = vmul.f32 %v754, %v731
    %v763 = vmul.f32 %v755, %v735
    %v764 = vmul.f32 %v756, %v737
    %v765 = vmul.f32 %v757, %v739
    %v766 = vmul.f32 %v758, %v741
    %v767 = vmul.f32 %v759, %v725
    %v768 = vmul.f32 %v760, %v727
    %v769 = vmul.f32 %v761, %v729
    %v770 = vmul.f32 %v762, %v731
    %v771 = vmul.f32 %v763, %v735
    %v772 = vmul.f32 %v764, %v737
    %v773 = vmul.f32 %v765, %v739
    %v774 = vmul.f32 %v766, %v741
    %v775 = vadd.f32 %v725, %v767
    %v776 = vadd.f32 %v727, %v768
    %v777 = vadd.f32 %v729, %v769
    %v778 = vadd.f32 %v731, %v770
    %v779 = vadd.f32 %v735, %v771
    %v780 = vadd.f32 %v737, %v772
    %v781 = vadd.f32 %v739, %v773
    %v782 = vadd.f32 %v741, %v774
    %v783 = vmul.f32 %v775, 0.7978846
    %v784 = vmul.f32 %v776, 0.7978846
    %v785 = vmul.f32 %v777, 0.7978846
    %v786 = vmul.f32 %v778, 0.7978846
    %v787 = vmul.f32 %v779, 0.7978846
    %v788 = vmul.f32 %v780, 0.7978846
    %v789 = vmul.f32 %v781, 0.7978846
    %v790 = vmul.f32 %v782, 0.7978846
    %v791 = vtanh.pop %v783
    %v792 = vtanh.pop %v784
    %v793 = vtanh.pop %v785
    %v794 = vtanh.pop %v786
    %v795 = vtanh.pop %v787
    %v796 = vtanh.pop %v788
    %v797 = vtanh.pop %v789
    %v798 = vtanh.pop %v790
    %v799 = vadd.f32 %v791, 1.0
    %v800 = vadd.f32 %v792, 1.0
    %v801 = vadd.f32 %v793, 1.0
    %v802 = vadd.f32 %v794, 1.0
    %v803 = vadd.f32 %v795, 1.0
    %v804 = vadd.f32 %v796, 1.0
    %v805 = vadd.f32 %v797, 1.0
    %v806 = vadd.f32 %v798, 1.0
    %v807 = vmul.f32 %v743, %v799
    %v808 = vmul.f32 %v744, %v800
    %v809 = vmul.f32 %v745, %v801
    %v810 = vmul.f32 %v746, %v802
    %v811 = vmul.f32 %v747, %v803
    %v812 = vmul.f32 %v748, %v804
    %v813 = vmul.f32 %v749, %v805
    %v814 = vmul.f32 %v750, %v806
    %v815 = vpack.c.bf16 %v809, %v807
    %v816 = vpack.c.bf16 %v810, %v808
    %v817 = vpack.c.bf16 %v813, %v811
    %v818 = vpack.c.bf16 %v814, %v812
    %v819 = vld [vmem:[#allocation8 + $0x80] sm:$0xff]
    %v820 = vld [vmem:[#allocation8 + $0x88] sm:$0xff]
    %v821 = vld [vmem:[#allocation8 + $0x90] sm:$0xff]
    %v822 = vld [vmem:[#allocation8 + $0x98] sm:$0xff]
    %v823 = vld [vmem:[#allocation8 + $0xa0] sm:$0xff]
    %v824 = vld [vmem:[#allocation8 + $0xa8] sm:$0xff]
    %v825 = vld [vmem:[#allocation8 + $0xb0] sm:$0xff]
    %v826 = vld [vmem:[#allocation8 + $0xb8] sm:$0xff]
    %v827 = vld [vmem:[#allocation8 + $0xc0] sm:$0xff]
    %v828 = vld [vmem:[#allocation8 + $0xc8] sm:$0xff]
    %v829 = vld [vmem:[#allocation8 + $0xd0] sm:$0xff]
    %v830 = vld [vmem:[#allocation8 + $0xd8] sm:$0xff]
    %v831 = vld [vmem:[#allocation8 + $0xe0] sm:$0xff]
    %v832 = vld [vmem:[#allocation8 + $0xe8] sm:$0xff]
    %v833 = vld [vmem:[#allocation8 + $0xf0] sm:$0xff]
    %v834 = vld [vmem:[#allocation8 + $0xf8] sm:$0xff]
    %v835 = vld [vmem:[#allocation8 + $0x100] sm:$0xff]
    %v836 = vld [vmem:[#allocation8 + $0x108] sm:$0xff]
    %v837 = vld [vmem:[#allocation8 + $0x110] sm:$0xff]
    %v838 = vld [vmem:[#allocation8 + $0x118] sm:$0xff]
    %v839 = vld [vmem:[#allocation8 + $0x120] sm:$0xff]
    %v840 = vld [vmem:[#allocation8 + $0x128] sm:$0xff]
    %v841 = vld [vmem:[#allocation8 + $0x130] sm:$0xff]
    %v842 = vld [vmem:[#allocation8 + $0x138] sm:$0xff]
    %v843 = vld [vmem:[#allocation8 + $0x140] sm:$0xff]
    %v844 = vld [vmem:[#allocation8 + $0x148] sm:$0xff]
    %v845 = vld [vmem:[#allocation8 + $0x150] sm:$0xff]
    %v846 = vld [vmem:[#allocation8 + $0x158] sm:$0xff]
    %v847 = vld [vmem:[#allocation8 + $0x160] sm:$0xff]
    %v848 = vld [vmem:[#allocation8 + $0x168] sm:$0xff]
    %v849 = vld [vmem:[#allocation8 + $0x170] sm:$0xff]
    %v850 = vld [vmem:[#allocation8 + $0x178] sm:$0xff]
    %v852 = vlaneseq
    %v853 = vshrl.u32 %v852, 7
    %v854 = vsub.s32 0, %v853
    %v855 = vrot.slane %v80, %v854
    %v856 = vlaneseq
    %v857 = vshrl.u32 %v856, 7
    %v858 = vsub.s32 1, %v857
    %v859 = vrot.slane %v80, %v858
    %v894 = vunpack.c.l.b16 %v819
    %v895 = vunpack.c.h.b16 %v819
    %v896 = vunpack.c.l.b16 %v820
    %v897 = vunpack.c.h.b16 %v820
    %v898 = vunpack.c.l.b16 %v821
    %v899 = vunpack.c.h.b16 %v821
    %v900 = vunpack.c.l.b16 %v822
    %v901 = vunpack.c.h.b16 %v822
    %v902 = vunpack.c.l.b16 %v823
    %v903 = vunpack.c.h.b16 %v823
    %v904 = vunpack.c.l.b16 %v824
    %v905 = vunpack.c.h.b16 %v824
    %v906 = vunpack.c.l.b16 %v825
    %v907 = vunpack.c.h.b16 %v825
    %v908 = vunpack.c.l.b16 %v826
    %v909 = vunpack.c.h.b16 %v826
    %v910 = vunpack.c.l.b16 %v827
    %v911 = vunpack.c.h.b16 %v827
    %v912 = vunpack.c.l.b16 %v828
    %v913 = vunpack.c.h.b16 %v828
    %v914 = vunpack.c.l.b16 %v829
    %v915 = vunpack.c.h.b16 %v829
    %v916 = vunpack.c.l.b16 %v830
    %v917 = vunpack.c.h.b16 %v830
    %v918 = vunpack.c.l.b16 %v831
    %v919 = vunpack.c.h.b16 %v831
    %v920 = vunpack.c.l.b16 %v832
    %v921 = vunpack.c.h.b16 %v832
    %v922 = vunpack.c.l.b16 %v833
    %v923 = vunpack.c.h.b16 %v833
    %v924 = vunpack.c.l.b16 %v834
    %v925 = vunpack.c.h.b16 %v834
    %v926 = vunpack.c.l.b16 %v835
    %v927 = vunpack.c.h.b16 %v835
    %v928 = vunpack.c.l.b16 %v836
    %v929 = vunpack.c.h.b16 %v836
    %v930 = vunpack.c.l.b16 %v837
    %v931 = vunpack.c.h.b16 %v837
    %v932 = vunpack.c.l.b16 %v838
    %v933 = vunpack.c.h.b16 %v838
    %v934 = vunpack.c.l.b16 %v839
    %v935 = vunpack.c.h.b16 %v839
    %v936 = vunpack.c.l.b16 %v840
    %v937 = vunpack.c.h.b16 %v840
    %v938 = vunpack.c.l.b16 %v841
    %v939 = vunpack.c.h.b16 %v841
    %v940 = vunpack.c.l.b16 %v842
    %v941 = vunpack.c.h.b16 %v842
    %v942 = vunpack.c.l.b16 %v843
    %v943 = vunpack.c.h.b16 %v843
    %v944 = vunpack.c.l.b16 %v844
    %v945 = vunpack.c.h.b16 %v844
    %v946 = vunpack.c.l.b16 %v845
    %v947 = vunpack.c.h.b16 %v845
    %v948 = vunpack.c.l.b16 %v846
    %v949 = vunpack.c.h.b16 %v846
    %v950 = vunpack.c.l.b16 %v847
    %v951 = vunpack.c.h.b16 %v847
    %v952 = vunpack.c.l.b16 %v848
    %v953 = vunpack.c.h.b16 %v848
    %v954 = vunpack.c.l.b16 %v849
    %v955 = vunpack.c.h.b16 %v849
    %v956 = vunpack.c.l.b16 %v850
    %v957 = vunpack.c.h.b16 %v850
    %v958 = vpack.c.b16 %v896, %v894
    %v959 = vpack.c.b16 %v897, %v895
    %v960 = vpack.c.b16 %v900, %v898
    %v961 = vpack.c.b16 %v901, %v899
    %v962 = vpack.c.b16 %v904, %v902
    %v963 = vpack.c.b16 %v905, %v903
    %v964 = vpack.c.b16 %v908, %v906
    %v965 = vpack.c.b16 %v909, %v907
    %v966 = vpack.c.b16 %v912, %v910
    %v967 = vpack.c.b16 %v913, %v911
    %v968 = vpack.c.b16 %v916, %v914
    %v969 = vpack.c.b16 %v917, %v915
    %v970 = vpack.c.b16 %v920, %v918
    %v971 = vpack.c.b16 %v921, %v919
    %v972 = vpack.c.b16 %v924, %v922
    %v973 = vpack.c.b16 %v925, %v923
    %v974 = vpack.c.b16 %v928, %v926
    %v975 = vpack.c.b16 %v929, %v927
    %v976 = vpack.c.b16 %v932, %v930
    %v977 = vpack.c.b16 %v933, %v931
    %v978 = vpack.c.b16 %v936, %v934
    %v979 = vpack.c.b16 %v937, %v935
    %v980 = vpack.c.b16 %v940, %v938
    %v981 = vpack.c.b16 %v941, %v939
    %v982 = vpack.c.b16 %v944, %v942
    %v983 = vpack.c.b16 %v945, %v943
    %v984 = vpack.c.b16 %v948, %v946
    %v985 = vpack.c.b16 %v949, %v947
    %v986 = vpack.c.b16 %v952, %v950
    %v987 = vpack.c.b16 %v953, %v951
    %v988 = vpack.c.b16 %v956, %v954
    %v989 = vpack.c.b16 %v957, %v955
    %1022 = vmatprep.subr.bf16.mxu0 %v959
    %1023 = vmatpush1.bf16.msra.mxu0 %v958
    %1024 = vmatprep.subr.bf16.mxu0 %v961
    %1025 = vmatpush1.bf16.msra.mxu0 %v960
    %1026 = vmatprep.subr.bf16.mxu0 %v963
    %1027 = vmatpush1.bf16.msra.mxu0 %v962
    %1028 = vmatprep.subr.bf16.mxu0 %v965
    %1029 = vmatpush1.bf16.msra.mxu0 %v964
    %1030 = vmatprep.subr.bf16.mxu0 %v967
    %1031 = vmatpush1.bf16.msra.mxu0 %v966
    %1032 = vmatprep.subr.bf16.mxu0 %v969
    %1033 = vmatpush1.bf16.msra.mxu0 %v968
    %1034 = vmatprep.subr.bf16.mxu0 %v971
    %1035 = vmatpush1.bf16.msra.mxu0 %v970
    %1036 = vmatprep.subr.bf16.mxu0 %v973
    %1037 = vmatpush1.bf16.msra.mxu0 %v972
    %1038 = vmatprep.subr.bf16.mxu0 %v975
    %1039 = vmatpush1.bf16.msra.mxu0 %v974
    %1040 = vmatprep.subr.bf16.mxu0 %v977
    %1041 = vmatpush1.bf16.msra.mxu0 %v976
    %1042 = vmatprep.subr.bf16.mxu0 %v979
    %1043 = vmatpush1.bf16.msra.mxu0 %v978
    %1044 = vmatprep.subr.bf16.mxu0 %v981
    %1045 = vmatpush1.bf16.msra.mxu0 %v980
    %1046 = vmatprep.subr.bf16.mxu0 %v983
    %1047 = vmatpush1.bf16.msra.mxu0 %v982
    %1048 = vmatprep.subr.bf16.mxu0 %v985
    %1049 = vmatpush1.bf16.msra.mxu0 %v984
    %1050 = vmatprep.subr.bf16.mxu0 %v987
    %1051 = vmatpush1.bf16.msra.mxu0 %v986
    %1052 = vmatprep.subr.bf16.mxu0 %v989
    %1053 = vmatpush1.bf16.msra.mxu0 %v988
    %1054 = vmatprep.mubr.bf16.mxu0 %v816
    %1055 = vmatmul.mubr.bf16.gmra.mrb[0].mxu0 %v815
    %v1056 = vpop.f32.mrb[0].mxu0
    %v1057 = vadd.f32 %v855, %v1056
    %v1058 = vpop.f32.mrb[0].mxu0
    %v1059 = vadd.f32 %v859, %v1058
    %v1060 = vpop.f32.mrb[0].mxu0
    %v1061 = vadd.f32 %v855, %v1060
    %v1062 = vpop.f32.mrb[0].mxu0
    %v1063 = vadd.f32 %v859, %v1062
    %1064 = vmatprep.mubr.bf16.mxu0 %v818
    %1065 = vmatmul.mubr.bf16.gmra.mrb[0].mxu0 %v817
    %v1066 = vpop.f32.mrb[0].mxu0
    %v1067 = vadd.f32 %v855, %v1066
    %v1068 = vpop.f32.mrb[0].mxu0
    %v1069 = vadd.f32 %v859, %v1068
    %v1070 = vpop.f32.mrb[0].mxu0
    %v1071 = vadd.f32 %v855, %v1070
    %v1072 = vpop.f32.mrb[0].mxu0
    %v1073 = vadd.f32 %v859, %v1072
    %1074 = vdwg.mxu0
    %v1075 = vmul.f32 %v1057, 0.5
    %v1076 = vmul.f32 %v1059, 0.5
    %v1077 = vmul.f32 %v1061, 0.5
    %v1078 = vmul.f32 %v1063, 0.5
    %v1079 = vmul.f32 %v1067, 0.5
    %v1080 = vmul.f32 %v1069, 0.5
    %v1081 = vmul.f32 %v1071, 0.5
    %v1082 = vmul.f32 %v1073, 0.5
    %v1083 = vmul.f32 %v1057, 0.044715
    %v1084 = vmul.f32 %v1059, 0.044715
    %v1085 = vmul.f32 %v1061, 0.044715
    %v1086 = vmul.f32 %v1063, 0.044715
    %v1087 = vmul.f32 %v1067, 0.044715
    %v1088 = vmul.f32 %v1069, 0.044715
    %v1089 = vmul.f32 %v1071, 0.044715
    %v1090 = vmul.f32 %v1073, 0.044715
    %v1091 = vmul.f32 %v1083, %v1057
    %v1092 = vmul.f32 %v1084, %v1059
    %v1093 = vmul.f32 %v1085, %v1061
    %v1094 = vmul.f32 %v1086, %v1063
    %v1095 = vmul.f32 %v1087, %v1067
    %v1096 = vmul.f32 %v1088, %v1069
    %v1097 = vmul.f32 %v1089, %v1071
    %v1098 = vmul.f32 %v1090, %v1073
    %v1099 = vmul.f32 %v1091, %v1057
    %v1100 = vmul.f32 %v1092, %v1059
    %v1101 = vmul.f32 %v1093, %v1061
    %v1102 = vmul.f32 %v1094, %v1063
    %v1103 = vmul.f32 %v1095, %v1067
    %v1104 = vmul.f32 %v1096, %v1069
    %v1105 = vmul.f32 %v1097, %v1071
    %v1106 = vmul.f32 %v1098, %v1073
    %v1107 = vadd.f32 %v1057, %v1099
    %v1108 = vadd.f32 %v1059, %v1100
    %v1109 = vadd.f32 %v1061, %v1101
    %v1110 = vadd.f32 %v1063, %v1102
    %v1111 = vadd.f32 %v1067, %v1103
    %v1112 = vadd.f32 %v1069, %v1104
    %v1113 = vadd.f32 %v1071, %v1105
    %v1114 = vadd.f32 %v1073, %v1106
    %v1115 = vmul.f32 %v1107, 0.7978846
    %v1116 = vmul.f32 %v1108, 0.7978846
    %v1117 = vmul.f32 %v1109, 0.7978846
    %v1118 = vmul.f32 %v1110, 0.7978846
    %v1119 = vmul.f32 %v1111, 0.7978846
    %v1120 = vmul.f32 %v1112, 0.7978846
    %v1121 = vmul.f32 %v1113, 0.7978846
    %v1122 = vmul.f32 %v1114, 0.7978846
    %v1123 = vtanh.pop %v1115
    %v1124 = vtanh.pop %v1116
    %v1125 = vtanh.pop %v1117
    %v1126 = vtanh.pop %v1118
    %v1127 = vtanh.pop %v1119
    %v1128 = vtanh.pop %v1120
    %v1129 = vtanh.pop %v1121
    %v1130 = vtanh.pop %v1122
    %v1131 = vadd.f32 %v1123, 1.0
    %v1132 = vadd.f32 %v1124, 1.0
    %v1133 = vadd.f32 %v1125, 1.0
    %v1134 = vadd.f32 %v1126, 1.0
    %v1135 = vadd.f32 %v1127, 1.0
    %v1136 = vadd.f32 %v1128, 1.0
    %v1137 = vadd.f32 %v1129, 1.0
    %v1138 = vadd.f32 %v1130, 1.0
    %v1139 = vmul.f32 %v1075, %v1131
    %v1140 = vmul.f32 %v1076, %v1132
    %v1141 = vmul.f32 %v1077, %v1133
    %v1142 = vmul.f32 %v1078, %v1134
    %v1143 = vmul.f32 %v1079, %v1135
    %v1144 = vmul.f32 %v1080, %v1136
    %v1145 = vmul.f32 %v1081, %v1137
    %v1146 = vmul.f32 %v1082, %v1138
    %v1148 = vlaneseq
    %v1149 = vshrl.u32 %v1148, 7
    %v1150 = vsub.s32 0, %v1149
    %v1151 = vrot.slane %v81, %v1150
    %v1152 = vlaneseq
    %v1153 = vshrl.u32 %v1152, 7
    %v1154 = vsub.s32 1, %v1153
    %v1155 = vrot.slane %v81, %v1154
    %v1158 = vmul.f32 %v1139, %v1151
    %v1159 = vmul.f32 %v1140, %v1155
    %v1160 = vmul.f32 %v1141, %v1151
    %v1161 = vmul.f32 %v1142, %v1155
    %v1162 = vmul.f32 %v1143, %v1151
    %v1163 = vmul.f32 %v1144, %v1155
    %v1164 = vmul.f32 %v1145, %v1151
    %v1165 = vmul.f32 %v1146, %v1155
    %v1166 = vadd.f32 %v1158, %v1159
    %1167 = vadd.xlane.f32.xlu0 %v1166
    %v1168 = vpop.xlane.xlu0 %1167
    %v1169 = vadd.f32 %v1160, %v1161
    %1170 = vadd.xlane.f32.xlu0 %v1169
    %v1171 = vpop.xlane.xlu0 %1170
    %v1172 = vadd.f32 %v1162, %v1163
    %1173 = vadd.xlane.f32.xlu0 %v1172
    %v1174 = vpop.xlane.xlu0 %1173
    %v1175 = vadd.f32 %v1164, %v1165
    %1176 = vadd.xlane.f32.xlu0 %v1175
    %v1177 = vpop.xlane.xlu0 %1176
    %v1179 = vlaneseq
    %v1180 = vshrl.u32 %v1179, 7
    %v1181 = vsub.s32 0, %v1180
    %v1182 = vrot.slane %v82, %v1181
    %v1184 = vadd.f32 %v1168, %v1182
    %v1185 = vadd.f32 %v1171, %v1182
    %v1186 = vadd.f32 %v1174, %v1182
    %v1187 = vadd.f32 %v1177, %v1182
    %v1188 = vmax.f32 %v1184, 0.0
    %v1189 = vmax.f32 %v1185, 0.0
    %v1190 = vmax.f32 %v1186, 0.0
    %v1191 = vmax.f32 %v1187, 0.0
    %v1192 = vand.u32 2147483647, %v1184
    %v1193 = vand.u32 2147483647, %v1185
    %v1194 = vand.u32 2147483647, %v1186
    %v1195 = vand.u32 2147483647, %v1187
    %v1196 = vsub.f32 0.0, %v1192
    %v1197 = vsub.f32 0.0, %v1193
    %v1198 = vsub.f32 0.0, %v1194
    %v1199 = vsub.f32 0.0, %v1195
    %v1200 = vmul.f32 %v1196, 1.442695
    %v1201 = vpow.pop %v1200
    %v1202 = vmul.f32 %v1197, 1.442695
    %v1203 = vpow.pop %v1202
    %v1204 = vmul.f32 %v1198, 1.442695
    %v1205 = vpow.pop %v1204
    %v1206 = vmul.f32 %v1199, 1.442695
    %v1207 = vpow.pop %v1206
    %v1208 = vadd.f32 %v1201, 1.0
    %v1209 = vlog2.pop %v1208
    %v1210 = vmul.f32 %v1209, 0.6931472
    %v1211 = vmul.f32 -0.5, %v1201
    %v1212 = vadd.f32 %v1211, 1.0
    %v1213 = vmul.f32 %v1212, %v1201
    %v1214 = vand.u32 2147483647, %v1201
    %vm1215 = vcmp.lt.f32.partialorder %v1214, 0.0004427343
    %v1216 = vsel %vm1215, %v1213, %v1210
    %v1217 = vadd.f32 %v1203, 1.0
    %v1218 = vlog2.pop %v1217
    %v1219 = vmul.f32 %v1218, 0.6931472
    %v1220 = vmul.f32 -0.5, %v1203
    %v1221 = vadd.f32 %v1220, 1.0
    %v1222 = vmul.f32 %v1221, %v1203
    %v1223 = vand.u32 2147483647, %v1203
    %vm1224 = vcmp.lt.f32.partialorder %v1223, 0.0004427343
    %v1225 = vsel %vm1224, %v1222, %v1219
    %v1226 = vadd.f32 %v1205, 1.0
    %v1227 = vlog2.pop %v1226
    %v1228 = vmul.f32 %v1227, 0.6931472
    %v1229 = vmul.f32 -0.5, %v1205
    %v1230 = vadd.f32 %v1229, 1.0
    %v1231 = vmul.f32 %v1230, %v1205
    %v1232 = vand.u32 2147483647, %v1205
    %vm1233 = vcmp.lt.f32.partialorder %v1232, 0.0004427343
    %v1234 = vsel %vm1233, %v1231, %v1228
    %v1235 = vadd.f32 %v1207, 1.0
    %v1236 = vlog2.pop %v1235
    %v1237 = vmul.f32 %v1236, 0.6931472
    %v1238 = vmul.f32 -0.5, %v1207
    %v1239 = vadd.f32 %v1238, 1.0
    %v1240 = vmul.f32 %v1239, %v1207
    %v1241 = vand.u32 2147483647, %v1207
    %vm1242 = vcmp.lt.f32.partialorder %v1241, 0.0004427343
    %v1243 = vsel %vm1242, %v1240, %v1237
    %v1244 = vadd.f32 %v1188, %v1216
    %v1245 = vadd.f32 %v1189, %v1225
    %v1246 = vadd.f32 %v1190, %v1234
    %v1247 = vadd.f32 %v1191, %v1243
    %1248 = vst [vmem:[#allocation10] sm:$0xff] %v1244
    %1249 = vst [vmem:[#allocation10 + $0x8] sm:$0xff] %v1245
    %1250 = vst [vmem:[#allocation10 + $0x10] sm:$0xff] %v1246
    %1251 = vst [vmem:[#allocation10 + $0x18] sm:$0xff] %v1247
    // Predicated region
    $region38: #{tpu_custom_call.1} parent=1 // pred_check
      _
    $region39: #{tpu_custom_call.1} parent=1 // pred_check_branch
      %1253 = sbr.rel (0) target = $region41
    $region40: #{tpu_custom_call.1} parent=1 // pred_region
      %s1255 = ssub.s32 512, 512
      %1256 = vsyncadd [#allocation4], %s1255
      %s1257 = sshll.u32 [#allocation10], 4
      %s1258 = int_to_ptr.vmem [resolvable:$true] %s1257
      %1263 = dma.vmem_to_hbm [thread:$0]  %s1258, 512, %s5, [#allocation4], 128, 128, 8
    $region41: #{tpu_custom_call.1} parent=1 // pred_fallthru
      _
    // Predicated region
    $region42: #{tpu_custom_call.1} parent=1 // pred_check
      _
    $region43: #{tpu_custom_call.1} parent=1 // pred_check_branch
      %1265 = sbr.rel (0) target = $region45
    $region44: #{tpu_custom_call.1} parent=1 // pred_region
      %1266 = dma.done [#allocation4], 512
    $region45: #{tpu_custom_call.1} parent=1 // pred_fallthru
      _
    %1267 = vsyncpa [#allocation3], 1
    %1268 = vsyncpa [#allocation6], 1
    %1269 = vsyncpa [#allocation9], 1
    %1270 = vsyncpa [#allocation4], 1

// kernel: tpu_custom_call.1
$region0: #{tpu_custom_call.1}
  #allocation0 [shape = 'u32[]', space=smem, size = 0x4, offset = 0x4, fixed_abs, tag = 'smem constant byte address 0x4 - core index']
  #allocation1 [shape = 'u32[144,128]{1,0:T(1,128)}', space=vmem, size = 0x12000, scoped, tag = 'internal scratch']
  %s0 = inlined_call_operand.hbm [shape: bf16[9,32,128], index: 0, kind: input, shape index: {}]
  %s1 = inlined_call_operand.hbm [shape: bf16[32,256], index: 1, kind: input, shape index: {}]
  %s2 = inlined_call_operand.hbm [shape: bf16[512,128], index: 2, kind: input, shape index: {}]
  %s3 = inlined_call_operand.hbm [shape: bf16[384,256], index: 3, kind: input, shape index: {}]
  %s4 = inlined_call_operand.vmem [shape: f32[1,1152], index: 4, kind: input, shape index: {}]
  %s5 = inlined_call_operand.hbm [shape: f32[32,128], index: 5, kind: output, shape index: {}]
  %s6 = sld [smem:[#allocation0]]
  $region46: #{tpu_custom_call.1} parent=0
    _
  %s8 = ssub.s32 1, %s6
  %s9 = scalar_select 0, %s8, %s6
  $region1: #{tpu_custom_call.1} parent=0
    #allocation2 [shape = 'u8[73728]{0}', space=vmem, size = 0x12000, scoped, tag = 'input window, operand 0, single buffered']
    #allocation3 [shape = 's32[1]{0}', space=sflag, size = 0x4, scoped, tag = 'scoped memory for tpu_custom_call.1']
    #allocation4 [shape = 's32[1]{0}', space=sflag, size = 0x4, scoped, tag = 'scoped memory for tpu_custom_call.1']
    #allocation5 [shape = 'u8[16384]{0}', space=vmem, size = 0x4000, scoped, tag = 'input window, operand 1, single buffered']
    #allocation6 [shape = 's32[1]{0}', space=sflag, size = 0x4, scoped, tag = 'scoped memory for tpu_custom_call.1']
    #allocation7 [shape = 'u8[131072]{0}', space=vmem, size = 0x20000, scoped, tag = 'input window, operand 2, single buffered']
    #allocation8 [shape = 'u8[196608]{0}', space=vmem, size = 0x30000, scoped, tag = 'input window, operand 3, single buffered']
    #allocation9 [shape = 's32[1]{0}', space=sflag, size = 0x4, scoped, tag = 'scoped memory for tpu_custom_call.1']
    #allocation10 [shape = 'u8[16384]{0}', space=vmem, size = 0x4000, scoped, tag = 'output window, operand 0, single buffered']
    %10 = vsyncpa [#allocation3], 0
    %11 = vsyncpa [#allocation6], 0
    %12 = vsyncpa [#allocation9], 0
    %13 = vsyncpa [#allocation4], 0
    // Predicated region
    $region2: #{tpu_custom_call.1} parent=1 // pred_check
      _
    $region3: #{tpu_custom_call.1} parent=1 // pred_check_branch
      %15 = sbr.rel (0) target = $region5
    $region4: #{tpu_custom_call.1} parent=1 // pred_region
      %s17 = ssub.s32 2304, 2304
      %18 = vsyncadd [#allocation3], %s17
      %s19 = sshll.u32 [#allocation2], 4
      %s20 = int_to_ptr.vmem [resolvable:$true] %s19
      %25 = dma.hbm_to_vmem [thread:$0]  %s0, 2304, %s20, [#allocation3], 64, 64, 4
    $region5: #{tpu_custom_call.1} parent=1 // pred_fallthru
      _
    // Predicated region
    $region6: #{tpu_custom_call.1} parent=1 // pred_check
      _
    $region7: #{tpu_custom_call.1} parent=1 // pred_check_branch
      %27 = sbr.rel (0) target = $region9
    $region8: #{tpu_custom_call.1} parent=1 // pred_region
      %s29 = ssub.s32 512, 512
      %30 = vsyncadd [#allocation6], %s29
      %s31 = sshll.u32 [#allocation5], 4
      %s32 = int_to_ptr.vmem [resolvable:$true] %s31
      %37 = dma.hbm_to_vmem [thread:$0]  %s1, 512, %s32, [#allocation6], 128, 128, 8
    $region9: #{tpu_custom_call.1} parent=1 // pred_fallthru
      _
    // Predicated region
    $region10: #{tpu_custom_call.1} parent=1 // pred_check
      _
    $region11: #{tpu_custom_call.1} parent=1 // pred_check_branch
      %39 = sbr.rel (0) target = $region13
    $region12: #{tpu_custom_call.1} parent=1 // pred_region
      %s41 = ssub.s32 4096, 4096
      %42 = vsyncadd [#allocation6], %s41
      %s43 = sshll.u32 [#allocation7], 4
      %s44 = int_to_ptr.vmem [resolvable:$true] %s43
      %49 = dma.hbm_to_vmem [thread:$0]  %s2, 4096, %s44, [#allocation6], 64, 64, 4
    $region13: #{tpu_custom_call.1} parent=1 // pred_fallthru
      _
    // Predicated region
    $region14: #{tpu_custom_call.1} parent=1 // pred_check
      _
    $region15: #{tpu_custom_call.1} parent=1 // pred_check_branch
      %51 = sbr.rel (0) target = $region17
    $region16: #{tpu_custom_call.1} parent=1 // pred_region
      %s53 = ssub.s32 6144, 6144
      %54 = vsyncadd [#allocation9], %s53
      %s55 = sshll.u32 [#allocation8], 4
      %s56 = int_to_ptr.vmem [resolvable:$true] %s55
      %61 = dma.hbm_to_vmem [thread:$0]  %s3, 6144, %s56, [#allocation9], 128, 128, 8
    $region17: #{tpu_custom_call.1} parent=1 // pred_fallthru
      _
    // Predicated region
    $region18: #{tpu_custom_call.1} parent=1 // pred_check
      _
    $region19: #{tpu_custom_call.1} parent=1 // pred_check_branch
      %63 = sbr.rel (0) target = $region21
    $region20: #{tpu_custom_call.1} parent=1 // pred_region
      _
    $region21: #{tpu_custom_call.1} parent=1 // pred_fallthru
      _
    // Predicated region
    $region22: #{tpu_custom_call.1} parent=1 // pred_check
      _
    $region23: #{tpu_custom_call.1} parent=1 // pred_check_branch
      %65 = sbr.rel (0) target = $region25
    $region24: #{tpu_custom_call.1} parent=1 // pred_region
      %66 = dma.done [#allocation3], 2304
    $region25: #{tpu_custom_call.1} parent=1 // pred_fallthru
      _
    // Predicated region
    $region26: #{tpu_custom_call.1} parent=1 // pred_check
      _
    $region27: #{tpu_custom_call.1} parent=1 // pred_check_branch
      %68 = sbr.rel (0) target = $region29
    $region28: #{tpu_custom_call.1} parent=1 // pred_region
      %69 = dma.done [#allocation6], 512
    $region29: #{tpu_custom_call.1} parent=1 // pred_fallthru
      _
    // Predicated region
    $region30: #{tpu_custom_call.1} parent=1 // pred_check
      _
    $region31: #{tpu_custom_call.1} parent=1 // pred_check_branch
      %71 = sbr.rel (0) target = $region33
    $region32: #{tpu_custom_call.1} parent=1 // pred_region
      %72 = dma.done [#allocation6], 4096
    $region33: #{tpu_custom_call.1} parent=1 // pred_fallthru
      _
    // Predicated region
    $region34: #{tpu_custom_call.1} parent=1 // pred_check
      _
    $region35: #{tpu_custom_call.1} parent=1 // pred_check_branch
      %74 = sbr.rel (0) target = $region37
    $region36: #{tpu_custom_call.1} parent=1 // pred_region
      %75 = dma.done [#allocation9], 6144
    $region37: #{tpu_custom_call.1} parent=1 // pred_fallthru
      _
    %v77 = vld [vmem:[%s4] sm:$0x1]
    %v78 = vld [vmem:[%s4 + $0x1] sm:$0x1]
    %v79 = vld [vmem:[%s4 + $0x2] sm:$0x3]
    %v80 = vld [vmem:[%s4 + $0x4] sm:$0x3]
    %v81 = vld [vmem:[%s4 + $0x6] sm:$0x3]
    %v82 = vld [vmem:[%s4 + $0x8] sm:$0x1]
    %v83 = vld [vmem:[#allocation2] sm:$0xf]
    %v84 = vld [vmem:[#allocation2 + $0x4] sm:$0xf]
    %v85 = vld [vmem:[#allocation2 + $0x8] sm:$0xf]
    %v86 = vld [vmem:[#allocation2 + $0xc] sm:$0xf]
    %v87 = vld [vmem:[#allocation2 + $0x10] sm:$0xf]
    %v88 = vld [vmem:[#allocation2 + $0x14] sm:$0xf]
    %v89 = vld [vmem:[#allocation2 + $0x18] sm:$0xf]
    %v90 = vld [vmem:[#allocation2 + $0x1c] sm:$0xf]
    %v91 = vld [vmem:[#allocation2 + $0x20] sm:$0xf]
    %v92 = vld [vmem:[#allocation2 + $0x24] sm:$0xf]
    %v93 = vld [vmem:[#allocation2 + $0x28] sm:$0xf]
    %v94 = vld [vmem:[#allocation2 + $0x2c] sm:$0xf]
    %v95 = vld [vmem:[#allocation2 + $0x30] sm:$0xf]
    %v96 = vld [vmem:[#allocation2 + $0x34] sm:$0xf]
    %v97 = vld [vmem:[#allocation2 + $0x38] sm:$0xf]
    %v98 = vld [vmem:[#allocation2 + $0x3c] sm:$0xf]
    %v99 = vld [vmem:[#allocation2 + $0x40] sm:$0xf]
    %v100 = vld [vmem:[#allocation2 + $0x44] sm:$0xf]
    %v101 = vld [vmem:[#allocation2 + $0x48] sm:$0xf]
    %v102 = vld [vmem:[#allocation2 + $0x4c] sm:$0xf]
    %v103 = vld [vmem:[#allocation2 + $0x50] sm:$0xf]
    %v104 = vld [vmem:[#allocation2 + $0x54] sm:$0xf]
    %v105 = vld [vmem:[#allocation2 + $0x58] sm:$0xf]
    %v106 = vld [vmem:[#allocation2 + $0x5c] sm:$0xf]
    %v107 = vld [vmem:[#allocation2 + $0x60] sm:$0xf]
    %v108 = vld [vmem:[#allocation2 + $0x64] sm:$0xf]
    %v109 = vld [vmem:[#allocation2 + $0x68] sm:$0xf]
    %v110 = vld [vmem:[#allocation2 + $0x6c] sm:$0xf]
    %v111 = vld [vmem:[#allocation2 + $0x70] sm:$0xf]
    %v112 = vld [vmem:[#allocation2 + $0x74] sm:$0xf]
    %v113 = vld [vmem:[#allocation2 + $0x78] sm:$0xf]
    %v114 = vld [vmem:[#allocation2 + $0x7c] sm:$0xf]
    %v115 = vld [vmem:[#allocation2 + $0x80] sm:$0xf]
    %v116 = vld [vmem:[#allocation2 + $0x84] sm:$0xf]
    %v117 = vld [vmem:[#allocation2 + $0x88] sm:$0xf]
    %v118 = vld [vmem:[#allocation2 + $0x8c] sm:$0xf]
    %v119 = vunpack.c.l.bf16 %v83
    %v120 = vunpack.c.l.bf16 %v84
    %v121 = vunpack.c.l.bf16 %v85
    %v122 = vunpack.c.l.bf16 %v86
    %v123 = vunpack.c.l.bf16 %v87
    %v124 = vunpack.c.l.bf16 %v88
    %v125 = vunpack.c.l.bf16 %v89
    %v126 = vunpack.c.l.bf16 %v90
    %v127 = vunpack.c.l.bf16 %v91
    %v128 = vunpack.c.l.bf16 %v92
    %v129 = vunpack.c.l.bf16 %v93
    %v130 = vunpack.c.l.bf16 %v94
    %v131 = vunpack.c.l.bf16 %v95
    %v132 = vunpack.c.l.bf16 %v96
    %v133 = vunpack.c.l.bf16 %v97
    %v134 = vunpack.c.l.bf16 %v98
    %v135 = vunpack.c.l.bf16 %v99
    %v136 = vunpack.c.l.bf16 %v100
    %v137 = vunpack.c.l.bf16 %v101
    %v138 = vunpack.c.l.bf16 %v102
    %v139 = vunpack.c.l.bf16 %v103
    %v140 = vunpack.c.l.bf16 %v104
    %v141 = vunpack.c.l.bf16 %v105
    %v142 = vunpack.c.l.bf16 %v106
    %v143 = vunpack.c.l.bf16 %v107
    %v144 = vunpack.c.l.bf16 %v108
    %v145 = vunpack.c.l.bf16 %v109
    %v146 = vunpack.c.l.bf16 %v110
    %v147 = vunpack.c.l.bf16 %v111
    %v148 = vunpack.c.l.bf16 %v112
    %v149 = vunpack.c.l.bf16 %v113
    %v150 = vunpack.c.l.bf16 %v114
    %v151 = vunpack.c.l.bf16 %v115
    %v152 = vunpack.c.l.bf16 %v116
    %v153 = vunpack.c.l.bf16 %v117
    %v154 = vunpack.c.l.bf16 %v118
    %v155 = vadd.f32 %v119, %v123
    %v156 = vadd.f32 %v155, %v127
    %v157 = vadd.f32 %v156, %v131
    %v158 = vadd.f32 %v157, %v135
    %v159 = vadd.f32 %v158, %v139
    %v160 = vadd.f32 %v159, %v143
    %v161 = vadd.f32 %v160, %v147
    %v162 = vadd.f32 %v161, %v151
    %v163 = vadd.f32 %v120, %v124
    %v164 = vadd.f32 %v163, %v128
    %v165 = vadd.f32 %v164, %v132
    %v166 = vadd.f32 %v165, %v136
    %v167 = vadd.f32 %v166, %v140
    %v168 = vadd.f32 %v167, %v144
    %v169 = vadd.f32 %v168, %v148
    %v170 = vadd.f32 %v169, %v152
    %v171 = vadd.f32 %v121, %v125
    %v172 = vadd.f32 %v171, %v129
    %v173 = vadd.f32 %v172, %v133
    %v174 = vadd.f32 %v173, %v137
    %v175 = vadd.f32 %v174, %v141
    %v176 = vadd.f32 %v175, %v145
    %v177 = vadd.f32 %v176, %v149
    %v178 = vadd.f32 %v177, %v153
    %v179 = vadd.f32 %v122, %v126
    %v180 = vadd.f32 %v179, %v130
    %v181 = vadd.f32 %v180, %v134
    %v182 = vadd.f32 %v181, %v138
    %v183 = vadd.f32 %v182, %v142
    %v184 = vadd.f32 %v183, %v146
    %v185 = vadd.f32 %v184, %v150
    %v186 = vadd.f32 %v185, %v154
    %v187 = vld [vmem:[#allocation5] sm:$0xff]
    %v188 = vld [vmem:[#allocation5 + $0x8] sm:$0xff]
    %v189 = vld [vmem:[#allocation5 + $0x10] sm:$0xff]
    %v190 = vld [vmem:[#allocation5 + $0x18] sm:$0xff]
    %v191 = vld [vmem:[#allocation7] sm:$0xf]
    %v192 = vld [vmem:[#allocation7 + $0x4] sm:$0xf]
    %v193 = vld [vmem:[#allocation7 + $0x8] sm:$0xf]
    %v194 = vld [vmem:[#allocation7 + $0xc] sm:$0xf]
    %v195 = vld [vmem:[#allocation7 + $0x10] sm:$0xf]
    %v196 = vld [vmem:[#allocation7 + $0x14] sm:$0xf]
    %v197 = vld [vmem:[#allocation7 + $0x18] sm:$0xf]
    %v198 = vld [vmem:[#allocation7 + $0x1c] sm:$0xf]
    %v199 = vld [vmem:[#allocation7 + $0x20] sm:$0xf]
    %v200 = vld [vmem:[#allocation7 + $0x24] sm:$0xf]
    %v201 = vld [vmem:[#allocation7 + $0x28] sm:$0xf]
    %v202 = vld [vmem:[#allocation7 + $0x2c] sm:$0xf]
    %v203 = vld [vmem:[#allocation7 + $0x30] sm:$0xf]
    %v204 = vld [vmem:[#allocation7 + $0x34] sm:$0xf]
    %v205 = vld [vmem:[#allocation7 + $0x38] sm:$0xf]
    %v206 = vld [vmem:[#allocation7 + $0x3c] sm:$0xf]
    %v207 = vld [vmem:[#allocation7 + $0x40] sm:$0xf]
    %v208 = vld [vmem:[#allocation7 + $0x44] sm:$0xf]
    %v209 = vld [vmem:[#allocation7 + $0x48] sm:$0xf]
    %v210 = vld [vmem:[#allocation7 + $0x4c] sm:$0xf]
    %v211 = vld [vmem:[#allocation7 + $0x50] sm:$0xf]
    %v212 = vld [vmem:[#allocation7 + $0x54] sm:$0xf]
    %v213 = vld [vmem:[#allocation7 + $0x58] sm:$0xf]
    %v214 = vld [vmem:[#allocation7 + $0x5c] sm:$0xf]
    %v215 = vld [vmem:[#allocation7 + $0x60] sm:$0xf]
    %v216 = vld [vmem:[#allocation7 + $0x64] sm:$0xf]
    %v217 = vld [vmem:[#allocation7 + $0x68] sm:$0xf]
    %v218 = vld [vmem:[#allocation7 + $0x6c] sm:$0xf]
    %v219 = vld [vmem:[#allocation7 + $0x70] sm:$0xf]
    %v220 = vld [vmem:[#allocation7 + $0x74] sm:$0xf]
    %v221 = vld [vmem:[#allocation7 + $0x78] sm:$0xf]
    %v222 = vld [vmem:[#allocation7 + $0x7c] sm:$0xf]
    %v224 = vlaneseq
    %v225 = vshrl.u32 %v224, 7
    %v226 = vsub.s32 0, %v225
    %v227 = vrot.slane %v77, %v226
    %v233 = vunpack.c.l.b16 %v187
    %v234 = vunpack.c.h.b16 %v187
    %v235 = vunpack.c.l.b16 %v188
    %v236 = vunpack.c.h.b16 %v188
    %v237 = vunpack.c.l.b16 %v189
    %v238 = vunpack.c.h.b16 %v189
    %v239 = vunpack.c.l.b16 %v190
    %v240 = vunpack.c.h.b16 %v190
    %v241 = vpack.c.b16 %v235, %v233
    %v242 = vpack.c.b16 %v236, %v234
    %v243 = vpack.c.b16 %v239, %v237
    %v244 = vpack.c.b16 %v240, %v238
    %v281 = vunpack.c.l.b16 %v191
    %v282 = vunpack.c.l.b16 %v192
    %v283 = vunpack.c.l.b16 %v193
    %v284 = vunpack.c.l.b16 %v194
    %v285 = vunpack.c.l.b16 %v195
    %v286 = vunpack.c.l.b16 %v196
    %v287 = vunpack.c.l.b16 %v197
    %v288 = vunpack.c.l.b16 %v198
    %v289 = vunpack.c.l.b16 %v199
    %v290 = vunpack.c.l.b16 %v200
    %v291 = vunpack.c.l.b16 %v201
    %v292 = vunpack.c.l.b16 %v202
    %v293 = vunpack.c.l.b16 %v203
    %v294 = vunpack.c.l.b16 %v204
    %v295 = vunpack.c.l.b16 %v205
    %v296 = vunpack.c.l.b16 %v206
    %v297 = vunpack.c.l.b16 %v207
    %v298 = vunpack.c.l.b16 %v208
    %v299 = vunpack.c.l.b16 %v209
    %v300 = vunpack.c.l.b16 %v210
    %v301 = vunpack.c.l.b16 %v211
    %v302 = vunpack.c.l.b16 %v212
    %v303 = vunpack.c.l.b16 %v213
    %v304 = vunpack.c.l.b16 %v214
    %v305 = vunpack.c.l.b16 %v215
    %v306 = vunpack.c.l.b16 %v216
    %v307 = vunpack.c.l.b16 %v217
    %v308 = vunpack.c.l.b16 %v218
    %v309 = vunpack.c.l.b16 %v219
    %v310 = vunpack.c.l.b16 %v220
    %v311 = vunpack.c.l.b16 %v221
    %v312 = vunpack.c.l.b16 %v222
    %v313 = vpack.c.b16 %v282, %v281
    %v314 = vpack.c.b16 %v284, %v283
    %v315 = vpack.c.b16 %v286, %v285
    %v316 = vpack.c.b16 %v288, %v287
    %v317 = vpack.c.b16 %v290, %v289
    %v318 = vpack.c.b16 %v292, %v291
    %v319 = vpack.c.b16 %v294, %v293
    %v320 = vpack.c.b16 %v296, %v295
    %v321 = vpack.c.b16 %v298, %v297
    %v322 = vpack.c.b16 %v300, %v299
    %v323 = vpack.c.b16 %v302, %v301
    %v324 = vpack.c.b16 %v304, %v303
    %v325 = vpack.c.b16 %v306, %v305
    %v326 = vpack.c.b16 %v308, %v307
    %v327 = vpack.c.b16 %v310, %v309
    %v328 = vpack.c.b16 %v312, %v311
    %345 = vmatprep.subr.bf16.mxu0 0
    %346 = vmatpush1.bf16.msra.mxu0 %v313
    %347 = vmatprep.subr.bf16.mxu0 0
    %348 = vmatpush1.bf16.msra.mxu0 %v314
    %349 = vmatprep.subr.bf16.mxu0 0
    %350 = vmatpush1.bf16.msra.mxu0 %v315
    %351 = vmatprep.subr.bf16.mxu0 0
    %352 = vmatpush1.bf16.msra.mxu0 %v316
    %353 = vmatprep.subr.bf16.mxu0 0
    %354 = vmatpush1.bf16.msra.mxu0 %v317
    %355 = vmatprep.subr.bf16.mxu0 0
    %356 = vmatpush1.bf16.msra.mxu0 %v318
    %357 = vmatprep.subr.bf16.mxu0 0
    %358 = vmatpush1.bf16.msra.mxu0 %v319
    %359 = vmatprep.subr.bf16.mxu0 0
    %360 = vmatpush1.bf16.msra.mxu0 %v320
    %361 = vmatprep.subr.bf16.mxu0 0
    %362 = vmatpush1.bf16.msra.mxu0 %v321
    %363 = vmatprep.subr.bf16.mxu0 0
    %364 = vmatpush1.bf16.msra.mxu0 %v322
    %365 = vmatprep.subr.bf16.mxu0 0
    %366 = vmatpush1.bf16.msra.mxu0 %v323
    %367 = vmatprep.subr.bf16.mxu0 0
    %368 = vmatpush1.bf16.msra.mxu0 %v324
    %369 = vmatprep.subr.bf16.mxu0 0
    %370 = vmatpush1.bf16.msra.mxu0 %v325
    %371 = vmatprep.subr.bf16.mxu0 0
    %372 = vmatpush1.bf16.msra.mxu0 %v326
    %373 = vmatprep.subr.bf16.mxu0 0
    %374 = vmatpush1.bf16.msra.mxu0 %v327
    %375 = vmatprep.subr.bf16.mxu0 0
    %376 = vmatpush1.bf16.msra.mxu0 %v328
    %377 = vmatprep.mubr.bf16.mxu0 %v242
    %378 = vmatmul.mubr.bf16.gmra.mrb[0].mxu0 %v241
    %v379 = vpop.f32.mrb[0].mxu0
    %v380 = vadd.f32 %v227, %v379
    %v381 = vpop.f32.mrb[0].mxu0
    %v382 = vpop.f32.mrb[0].mxu0
    %v383 = vadd.f32 %v227, %v382
    %v384 = vpop.f32.mrb[0].mxu0
    %385 = vmatprep.mubr.bf16.mxu0 %v244
    %386 = vmatmul.mubr.bf16.gmra.mrb[0].mxu0 %v243
    %v387 = vpop.f32.mrb[0].mxu0
    %v388 = vadd.f32 %v227, %v387
    %v389 = vpop.f32.mrb[0].mxu0
    %v390 = vpop.f32.mrb[0].mxu0
    %v391 = vadd.f32 %v227, %v390
    %v392 = vpop.f32.mrb[0].mxu0
    %393 = vdwg.mxu0
    %v394 = vpack.c.bf16 %v170, %v162
    %v395 = vpack.c.bf16 %v186, %v178
    %v396 = vpack.c.bf16 %v383, %v380
    %v397 = vpack.c.bf16 %v391, %v388
    %v398 = vld [vmem:[#allocation7 + $0x80] sm:$0xf]
    %v399 = vld [vmem:[#allocation7 + $0x84] sm:$0xf]
    %v400 = vld [vmem:[#allocation7 + $0x88] sm:$0xf]
    %v401 = vld [vmem:[#allocation7 + $0x8c] sm:$0xf]
    %v402 = vld [vmem:[#allocation7 + $0x90] sm:$0xf]
    %v403 = vld [vmem:[#allocation7 + $0x94] sm:$0xf]
    %v404 = vld [vmem:[#allocation7 + $0x98] sm:$0xf]
    %v405 = vld [vmem:[#allocation7 + $0x9c] sm:$0xf]
    %v406 = vld [vmem:[#allocation7 + $0xa0] sm:$0xf]
    %v407 = vld [vmem:[#allocation7 + $0xa4] sm:$0xf]
    %v408 = vld [vmem:[#allocation7 + $0xa8] sm:$0xf]
    %v409 = vld [vmem:[#allocation7 + $0xac] sm:$0xf]
    %v410 = vld [vmem:[#allocation7 + $0xb0] sm:$0xf]
    %v411 = vld [vmem:[#allocation7 + $0xb4] sm:$0xf]
    %v412 = vld [vmem:[#allocation7 + $0xb8] sm:$0xf]
    %v413 = vld [vmem:[#allocation7 + $0xbc] sm:$0xf]
    %v414 = vld [vmem:[#allocation7 + $0xc0] sm:$0xf]
    %v415 = vld [vmem:[#allocation7 + $0xc4] sm:$0xf]
    %v416 = vld [vmem:[#allocation7 + $0xc8] sm:$0xf]
    %v417 = vld [vmem:[#allocation7 + $0xcc] sm:$0xf]
    %v418 = vld [vmem:[#allocation7 + $0xd0] sm:$0xf]
    %v419 = vld [vmem:[#allocation7 + $0xd4] sm:$0xf]
    %v420 = vld [vmem:[#allocation7 + $0xd8] sm:$0xf]
    %v421 = vld [vmem:[#allocation7 + $0xdc] sm:$0xf]
    %v422 = vld [vmem:[#allocation7 + $0xe0] sm:$0xf]
    %v423 = vld [vmem:[#allocation7 + $0xe4] sm:$0xf]
    %v424 = vld [vmem:[#allocation7 + $0xe8] sm:$0xf]
    %v425 = vld [vmem:[#allocation7 + $0xec] sm:$0xf]
    %v426 = vld [vmem:[#allocation7 + $0xf0] sm:$0xf]
    %v427 = vld [vmem:[#allocation7 + $0xf4] sm:$0xf]
    %v428 = vld [vmem:[#allocation7 + $0xf8] sm:$0xf]
    %v429 = vld [vmem:[#allocation7 + $0xfc] sm:$0xf]
    %v431 = vlaneseq
    %v432 = vshrl.u32 %v431, 7
    %v433 = vsub.s32 0, %v432
    %v434 = vrot.slane %v78, %v433
    %v468 = vunpack.c.l.b16 %v398
    %v469 = vunpack.c.l.b16 %v399
    %v470 = vunpack.c.l.b16 %v400
    %v471 = vunpack.c.l.b16 %v401
    %v472 = vunpack.c.l.b16 %v402
    %v473 = vunpack.c.l.b16 %v403
    %v474 = vunpack.c.l.b16 %v404
    %v475 = vunpack.c.l.b16 %v405
    %v476 = vunpack.c.l.b16 %v406
    %v477 = vunpack.c.l.b16 %v407
    %v478 = vunpack.c.l.b16 %v408
    %v479 = vunpack.c.l.b16 %v409
    %v480 = vunpack.c.l.b16 %v410
    %v481 = vunpack.c.l.b16 %v411
    %v482 = vunpack.c.l.b16 %v412
    %v483 = vunpack.c.l.b16 %v413
    %v484 = vunpack.c.l.b16 %v414
    %v485 = vunpack.c.l.b16 %v415
    %v486 = vunpack.c.l.b16 %v416
    %v487 = vunpack.c.l.b16 %v417
    %v488 = vunpack.c.l.b16 %v418
    %v489 = vunpack.c.l.b16 %v419
    %v490 = vunpack.c.l.b16 %v420
    %v491 = vunpack.c.l.b16 %v421
    %v492 = vunpack.c.l.b16 %v422
    %v493 = vunpack.c.l.b16 %v423
    %v494 = vunpack.c.l.b16 %v424
    %v495 = vunpack.c.l.b16 %v425
    %v496 = vunpack.c.l.b16 %v426
    %v497 = vunpack.c.l.b16 %v427
    %v498 = vunpack.c.l.b16 %v428
    %v499 = vunpack.c.l.b16 %v429
    %v500 = vpack.c.b16 %v469, %v468
    %v501 = vpack.c.b16 %v471, %v470
    %v502 = vpack.c.b16 %v473, %v472
    %v503 = vpack.c.b16 %v475, %v474
    %v504 = vpack.c.b16 %v477, %v476
    %v505 = vpack.c.b16 %v479, %v478
    %v506 = vpack.c.b16 %v481, %v480
    %v507 = vpack.c.b16 %v483, %v482
    %v508 = vpack.c.b16 %v485, %v484
    %v509 = vpack.c.b16 %v487, %v486
    %v510 = vpack.c.b16 %v489, %v488
    %v511 = vpack.c.b16 %v491, %v490
    %v512 = vpack.c.b16 %v493, %v492
    %v513 = vpack.c.b16 %v495, %v494
    %v514 = vpack.c.b16 %v497, %v496
    %v515 = vpack.c.b16 %v499, %v498
    %532 = vmatprep.subr.bf16.mxu0 0
    %533 = vmatpush1.bf16.msra.mxu0 %v500
    %534 = vmatprep.subr.bf16.mxu0 0
    %535 = vmatpush1.bf16.msra.mxu0 %v501
    %536 = vmatprep.subr.bf16.mxu0 0
    %537 = vmatpush1.bf16.msra.mxu0 %v502
    %538 = vmatprep.subr.bf16.mxu0 0
    %539 = vmatpush1.bf16.msra.mxu0 %v503
    %540 = vmatprep.subr.bf16.mxu0 0
    %541 = vmatpush1.bf16.msra.mxu0 %v504
    %542 = vmatprep.subr.bf16.mxu0 0
    %543 = vmatpush1.bf16.msra.mxu0 %v505
    %544 = vmatprep.subr.bf16.mxu0 0
    %545 = vmatpush1.bf16.msra.mxu0 %v506
    %546 = vmatprep.subr.bf16.mxu0 0
    %547 = vmatpush1.bf16.msra.mxu0 %v507
    %548 = vmatprep.subr.bf16.mxu0 0
    %549 = vmatpush1.bf16.msra.mxu0 %v508
    %550 = vmatprep.subr.bf16.mxu0 0
    %551 = vmatpush1.bf16.msra.mxu0 %v509
    %552 = vmatprep.subr.bf16.mxu0 0
    %553 = vmatpush1.bf16.msra.mxu0 %v510
    %554 = vmatprep.subr.bf16.mxu0 0
    %555 = vmatpush1.bf16.msra.mxu0 %v511
    %556 = vmatprep.subr.bf16.mxu0 0
    %557 = vmatpush1.bf16.msra.mxu0 %v512
    %558 = vmatprep.subr.bf16.mxu0 0
    %559 = vmatpush1.bf16.msra.mxu0 %v513
    %560 = vmatprep.subr.bf16.mxu0 0
    %561 = vmatpush1.bf16.msra.mxu0 %v514
    %562 = vmatprep.subr.bf16.mxu0 0
    %563 = vmatpush1.bf16.msra.mxu0 %v515
    %564 = vmatprep.mubr.bf16.mxu0 %v396
    %565 = vmatmul.mubr.bf16.gmra.mrb[0].mxu0 %v394
    %v566 = vpop.f32.mrb[0].mxu0
    %v567 = vadd.f32 %v434, %v566
    %v568 = vpop.f32.mrb[0].mxu0
    %v569 = vpop.f32.mrb[0].mxu0
    %v570 = vadd.f32 %v434, %v569
    %v571 = vpop.f32.mrb[0].mxu0
    %572 = vmatprep.mubr.bf16.mxu0 %v397
    %573 = vmatmul.mubr.bf16.gmra.mrb[0].mxu0 %v395
    %v574 = vpop.f32.mrb[0].mxu0
    %v575 = vadd.f32 %v434, %v574
    %v576 = vpop.f32.mrb[0].mxu0
    %v577 = vpop.f32.mrb[0].mxu0
    %v578 = vadd.f32 %v434, %v577
    %v579 = vpop.f32.mrb[0].mxu0
    %580 = vdwg.mxu0
    %v581 = vpack.c.bf16 %v570, %v567
    %v582 = vpack.c.bf16 %v578, %v575
    %v583 = vld [vmem:[#allocation8] sm:$0xff]
    %v584 = vld [vmem:[#allocation8 + $0x8] sm:$0xff]
    %v585 = vld [vmem:[#allocation8 + $0x10] sm:$0xff]
    %v586 = vld [vmem:[#allocation8 + $0x18] sm:$0xff]
    %v587 = vld [vmem:[#allocation8 + $0x20] sm:$0xff]
    %v588 = vld [vmem:[#allocation8 + $0x28] sm:$0xff]
    %v589 = vld [vmem:[#allocation8 + $0x30] sm:$0xff]
    %v590 = vld [vmem:[#allocation8 + $0x38] sm:$0xff]
    %v591 = vld [vmem:[#allocation8 + $0x40] sm:$0xff]
    %v592 = vld [vmem:[#allocation8 + $0x48] sm:$0xff]
    %v593 = vld [vmem:[#allocation8 + $0x50] sm:$0xff]
    %v594 = vld [vmem:[#allocation8 + $0x58] sm:$0xff]
    %v595 = vld [vmem:[#allocation8 + $0x60] sm:$0xff]
    %v596 = vld [vmem:[#allocation8 + $0x68] sm:$0xff]
    %v597 = vld [vmem:[#allocation8 + $0x70] sm:$0xff]
    %v598 = vld [vmem:[#allocation8 + $0x78] sm:$0xff]
    %v600 = vlaneseq
    %v601 = vshrl.u32 %v600, 7
    %v602 = vsub.s32 0, %v601
    %v603 = vrot.slane %v79, %v602
    %v604 = vlaneseq
    %v605 = vshrl.u32 %v604, 7
    %v606 = vsub.s32 1, %v605
    %v607 = vrot.slane %v79, %v606
    %v626 = vunpack.c.l.b16 %v583
    %v627 = vunpack.c.h.b16 %v583
    %v628 = vunpack.c.l.b16 %v584
    %v629 = vunpack.c.h.b16 %v584
    %v630 = vunpack.c.l.b16 %v585
    %v631 = vunpack.c.h.b16 %v585
    %v632 = vunpack.c.l.b16 %v586
    %v633 = vunpack.c.h.b16 %v586
    %v634 = vunpack.c.l.b16 %v587
    %v635 = vunpack.c.h.b16 %v587
    %v636 = vunpack.c.l.b16 %v588
    %v637 = vunpack.c.h.b16 %v588
    %v638 = vunpack.c.l.b16 %v589
    %v639 = vunpack.c.h.b16 %v589
    %v640 = vunpack.c.l.b16 %v590
    %v641 = vunpack.c.h.b16 %v590
    %v642 = vunpack.c.l.b16 %v591
    %v643 = vunpack.c.h.b16 %v591
    %v644 = vunpack.c.l.b16 %v592
    %v645 = vunpack.c.h.b16 %v592
    %v646 = vunpack.c.l.b16 %v593
    %v647 = vunpack.c.h.b16 %v593
    %v648 = vunpack.c.l.b16 %v594
    %v649 = vunpack.c.h.b16 %v594
    %v650 = vunpack.c.l.b16 %v595
    %v651 = vunpack.c.h.b16 %v595
    %v652 = vunpack.c.l.b16 %v596
    %v653 = vunpack.c.h.b16 %v596
    %v654 = vunpack.c.l.b16 %v597
    %v655 = vunpack.c.h.b16 %v597
    %v656 = vunpack.c.l.b16 %v598
    %v657 = vunpack.c.h.b16 %v598
    %v658 = vpack.c.b16 %v628, %v626
    %v659 = vpack.c.b16 %v629, %v627
    %v660 = vpack.c.b16 %v632, %v630
    %v661 = vpack.c.b16 %v633, %v631
    %v662 = vpack.c.b16 %v636, %v634
    %v663 = vpack.c.b16 %v637, %v635
    %v664 = vpack.c.b16 %v640, %v638
    %v665 = vpack.c.b16 %v641, %v639
    %v666 = vpack.c.b16 %v644, %v642
    %v667 = vpack.c.b16 %v645, %v643
    %v668 = vpack.c.b16 %v648, %v646
    %v669 = vpack.c.b16 %v649, %v647
    %v670 = vpack.c.b16 %v652, %v650
    %v671 = vpack.c.b16 %v653, %v651
    %v672 = vpack.c.b16 %v656, %v654
    %v673 = vpack.c.b16 %v657, %v655
    %690 = vmatprep.subr.bf16.mxu0 %v659
    %691 = vmatpush1.bf16.msra.mxu0 %v658
    %692 = vmatprep.subr.bf16.mxu0 %v661
    %693 = vmatpush1.bf16.msra.mxu0 %v660
    %694 = vmatprep.subr.bf16.mxu0 %v663
    %695 = vmatpush1.bf16.msra.mxu0 %v662
    %696 = vmatprep.subr.bf16.mxu0 %v665
    %697 = vmatpush1.bf16.msra.mxu0 %v664
    %698 = vmatprep.subr.bf16.mxu0 %v667
    %699 = vmatpush1.bf16.msra.mxu0 %v666
    %700 = vmatprep.subr.bf16.mxu0 %v669
    %701 = vmatpush1.bf16.msra.mxu0 %v668
    %702 = vmatprep.subr.bf16.mxu0 %v671
    %703 = vmatpush1.bf16.msra.mxu0 %v670
    %704 = vmatprep.subr.bf16.mxu0 %v673
    %705 = vmatpush1.bf16.msra.mxu0 %v672
    %706 = vmatprep.subr.bf16.mxu0 0
    %707 = vmatpush1.bf16.msra.mxu0 0
    %708 = vmatprep.subr.bf16.mxu0 0
    %709 = vmatpush1.bf16.msra.mxu0 0
    %710 = vmatprep.subr.bf16.mxu0 0
    %711 = vmatpush1.bf16.msra.mxu0 0
    %712 = vmatprep.subr.bf16.mxu0 0
    %713 = vmatpush1.bf16.msra.mxu0 0
    %714 = vmatprep.subr.bf16.mxu0 0
    %715 = vmatpush1.bf16.msra.mxu0 0
    %716 = vmatprep.subr.bf16.mxu0 0
    %717 = vmatpush1.bf16.msra.mxu0 0
    %718 = vmatprep.subr.bf16.mxu0 0
    %719 = vmatpush1.bf16.msra.mxu0 0
    %720 = vmatprep.subr.bf16.mxu0 0
    %721 = vmatpush1.bf16.msra.mxu0 0
    %722 = vmatprep.mubr.bf16.mxu0 0
    %723 = vmatmul.mubr.bf16.gmra.mrb[0].mxu0 %v581
    %v724 = vpop.f32.mrb[0].mxu0
    %v725 = vadd.f32 %v603, %v724
    %v726 = vpop.f32.mrb[0].mxu0
    %v727 = vadd.f32 %v607, %v726
    %v728 = vpop.f32.mrb[0].mxu0
    %v729 = vadd.f32 %v603, %v728
    %v730 = vpop.f32.mrb[0].mxu0
    %v731 = vadd.f32 %v607, %v730
    %732 = vmatprep.mubr.bf16.mxu0 0
    %733 = vmatmul.mubr.bf16.gmra.mrb[0].mxu0 %v582
    %v734 = vpop.f32.mrb[0].mxu0
    %v735 = vadd.f32 %v603, %v734
    %v736 = vpop.f32.mrb[0].mxu0
    %v737 = vadd.f32 %v607, %v736
    %v738 = vpop.f32.mrb[0].mxu0
    %v739 = vadd.f32 %v603, %v738
    %v740 = vpop.f32.mrb[0].mxu0
    %v741 = vadd.f32 %v607, %v740
    %742 = vdwg.mxu0
    %v743 = vmul.f32 %v725, 0.5
    %v744 = vmul.f32 %v727, 0.5
    %v745 = vmul.f32 %v729, 0.5
    %v746 = vmul.f32 %v731, 0.5
    %v747 = vmul.f32 %v735, 0.5
    %v748 = vmul.f32 %v737, 0.5
    %v749 = vmul.f32 %v739, 0.5
    %v750 = vmul.f32 %v741, 0.5
    %v751 = vmul.f32 %v725, 0.044715
    %v752 = vmul.f32 %v727, 0.044715
    %v753 = vmul.f32 %v729, 0.044715
    %v754 = vmul.f32 %v731, 0.044715
    %v755 = vmul.f32 %v735, 0.044715
    %v756 = vmul.f32 %v737, 0.044715
    %v757 = vmul.f32 %v739, 0.044715
    %v758 = vmul.f32 %v741, 0.044715
    %v759 = vmul.f32 %v751, %v725
    %v760 = vmul.f32 %v752, %v727
    %v761 = vmul.f32 %v753, %v729
    %v762 = vmul.f32 %v754, %v731
    %v763 = vmul.f32 %v755, %v735
    %v764 = vmul.f32 %v756, %v737
    %v765 = vmul.f32 %v757, %v739
    %v766 = vmul.f32 %v758, %v741
    %v767 = vmul.f32 %v759, %v725
    %v768 = vmul.f32 %v760, %v727
    %v769 = vmul.f32 %v761, %v729
    %v770 = vmul.f32 %v762, %v731
    %v771 = vmul.f32 %v763, %v735
    %v772 = vmul.f32 %v764, %v737
    %v773 = vmul.f32 %v765, %v739
    %v774 = vmul.f32 %v766, %v741
    %v775 = vadd.f32 %v725, %v767
    %v776 = vadd.f32 %v727, %v768
    %v777 = vadd.f32 %v729, %v769
    %v778 = vadd.f32 %v731, %v770
    %v779 = vadd.f32 %v735, %v771
    %v780 = vadd.f32 %v737, %v772
    %v781 = vadd.f32 %v739, %v773
    %v782 = vadd.f32 %v741, %v774
    %v783 = vmul.f32 %v775, 0.7978846
    %v784 = vmul.f32 %v776, 0.7978846
    %v785 = vmul.f32 %v777, 0.7978846
    %v786 = vmul.f32 %v778, 0.7978846
    %v787 = vmul.f32 %v779, 0.7978846
    %v788 = vmul.f32 %v780, 0.7978846
    %v789 = vmul.f32 %v781, 0.7978846
    %v790 = vmul.f32 %v782, 0.7978846
    %v791 = vtanh.pop %v783
    %v792 = vtanh.pop %v784
    %v793 = vtanh.pop %v785
    %v794 = vtanh.pop %v786
    %v795 = vtanh.pop %v787
    %v796 = vtanh.pop %v788
    %v797 = vtanh.pop %v789
    %v798 = vtanh.pop %v790
    %v799 = vadd.f32 %v791, 1.0
    %v800 = vadd.f32 %v792, 1.0
    %v801 = vadd.f32 %v793, 1.0
    %v802 = vadd.f32 %v794, 1.0
    %v803 = vadd.f32 %v795, 1.0
    %v804 = vadd.f32 %v796, 1.0
    %v805 = vadd.f32 %v797, 1.0
    %v806 = vadd.f32 %v798, 1.0
    %v807 = vmul.f32 %v743, %v799
    %v808 = vmul.f32 %v744, %v800
    %v809 = vmul.f32 %v745, %v801
    %v810 = vmul.f32 %v746, %v802
    %v811 = vmul.f32 %v747, %v803
    %v812 = vmul.f32 %v748, %v804
    %v813 = vmul.f32 %v749, %v805
    %v814 = vmul.f32 %v750, %v806
    %v815 = vpack.c.bf16 %v809, %v807
    %v816 = vpack.c.bf16 %v810, %v808
    %v817 = vpack.c.bf16 %v813, %v811
    %v818 = vpack.c.bf16 %v814, %v812
    %v819 = vld [vmem:[#allocation8 + $0x80] sm:$0xff]
    %v820 = vld [vmem:[#allocation8 + $0x88] sm:$0xff]
    %v821 = vld [vmem:[#allocation8 + $0x90] sm:$0xff]
    %v822 = vld [vmem:[#allocation8 + $0x98] sm:$0xff]
    %v823 = vld [vmem:[#allocation8 + $0xa0] sm:$0xff]
    %v824 = vld [vmem:[#allocation8 + $0xa8] sm:$0xff]
    %v825 = vld [vmem:[#allocation8 + $0xb0] sm:$0xff]
    %v826 = vld [vmem:[#allocation8 + $0xb8] sm:$0xff]
    %v827 = vld [vmem:[#allocation8 + $0xc0] sm:$0xff]
    %v828 = vld [vmem:[#allocation8 + $0xc8] sm:$0xff]
    %v829 = vld [vmem:[#allocation8 + $0xd0] sm:$0xff]
    %v830 = vld [vmem:[#allocation8 + $0xd8] sm:$0xff]
    %v831 = vld [vmem:[#allocation8 + $0xe0] sm:$0xff]
    %v832 = vld [vmem:[#allocation8 + $0xe8] sm:$0xff]
    %v833 = vld [vmem:[#allocation8 + $0xf0] sm:$0xff]
    %v834 = vld [vmem:[#allocation8 + $0xf8] sm:$0xff]
    %v835 = vld [vmem:[#allocation8 + $0x100] sm:$0xff]
    %v836 = vld [vmem:[#allocation8 + $0x108] sm:$0xff]
    %v837 = vld [vmem:[#allocation8 + $0x110] sm:$0xff]
    %v838 = vld [vmem:[#allocation8 + $0x118] sm:$0xff]
    %v839 = vld [vmem:[#allocation8 + $0x120] sm:$0xff]
    %v840 = vld [vmem:[#allocation8 + $0x128] sm:$0xff]
    %v841 = vld [vmem:[#allocation8 + $0x130] sm:$0xff]
    %v842 = vld [vmem:[#allocation8 + $0x138] sm:$0xff]
    %v843 = vld [vmem:[#allocation8 + $0x140] sm:$0xff]
    %v844 = vld [vmem:[#allocation8 + $0x148] sm:$0xff]
    %v845 = vld [vmem:[#allocation8 + $0x150] sm:$0xff]
    %v846 = vld [vmem:[#allocation8 + $0x158] sm:$0xff]
    %v847 = vld [vmem:[#allocation8 + $0x160] sm:$0xff]
    %v848 = vld [vmem:[#allocation8 + $0x168] sm:$0xff]
    %v849 = vld [vmem:[#allocation8 + $0x170] sm:$0xff]
    %v850 = vld [vmem:[#allocation8 + $0x178] sm:$0xff]
    %v852 = vlaneseq
    %v853 = vshrl.u32 %v852, 7
    %v854 = vsub.s32 0, %v853
    %v855 = vrot.slane %v80, %v854
    %v856 = vlaneseq
    %v857 = vshrl.u32 %v856, 7
    %v858 = vsub.s32 1, %v857
    %v859 = vrot.slane %v80, %v858
    %v894 = vunpack.c.l.b16 %v819
    %v895 = vunpack.c.h.b16 %v819
    %v896 = vunpack.c.l.b16 %v820
    %v897 = vunpack.c.h.b16 %v820
    %v898 = vunpack.c.l.b16 %v821
    %v899 = vunpack.c.h.b16 %v821
    %v900 = vunpack.c.l.b16 %v822
    %v901 = vunpack.c.h.b16 %v822
    %v902 = vunpack.c.l.b16 %v823
    %v903 = vunpack.c.h.b16 %v823
    %v904 = vunpack.c.l.b16 %v824
    %v905 = vunpack.c.h.b16 %v824
    %v906 = vunpack.c.l.b16 %v825
    %v907 = vunpack.c.h.b16 %v825
    %v908 = vunpack.c.l.b16 %v826
    %v909 = vunpack.c.h.b16 %v826
    %v910 = vunpack.c.l.b16 %v827
    %v911 = vunpack.c.h.b16 %v827
    %v912 = vunpack.c.l.b16 %v828
    %v913 = vunpack.c.h.b16 %v828
    %v914 = vunpack.c.l.b16 %v829
    %v915 = vunpack.c.h.b16 %v829
    %v916 = vunpack.c.l.b16 %v830
    %v917 = vunpack.c.h.b16 %v830
    %v918 = vunpack.c.l.b16 %v831
    %v919 = vunpack.c.h.b16 %v831
    %v920 = vunpack.c.l.b16 %v832
    %v921 = vunpack.c.h.b16 %v832
    %v922 = vunpack.c.l.b16 %v833
    %v923 = vunpack.c.h.b16 %v833
    %v924 = vunpack.c.l.b16 %v834
    %v925 = vunpack.c.h.b16 %v834
    %v926 = vunpack.c.l.b16 %v835
    %v927 = vunpack.c.h.b16 %v835
    %v928 = vunpack.c.l.b16 %v836
    %v929 = vunpack.c.h.b16 %v836
    %v930 = vunpack.c.l.b16 %v837
    %v931 = vunpack.c.h.b16 %v837
    %v932 = vunpack.c.l.b16 %v838
    %v933 = vunpack.c.h.b16 %v838
    %v934 = vunpack.c.l.b16 %v839
    %v935 = vunpack.c.h.b16 %v839
    %v936 = vunpack.c.l.b16 %v840
    %v937 = vunpack.c.h.b16 %v840
    %v938 = vunpack.c.l.b16 %v841
    %v939 = vunpack.c.h.b16 %v841
    %v940 = vunpack.c.l.b16 %v842
    %v941 = vunpack.c.h.b16 %v842
    %v942 = vunpack.c.l.b16 %v843
    %v943 = vunpack.c.h.b16 %v843
    %v944 = vunpack.c.l.b16 %v844
    %v945 = vunpack.c.h.b16 %v844
    %v946 = vunpack.c.l.b16 %v845
    %v947 = vunpack.c.h.b16 %v845
    %v948 = vunpack.c.l.b16 %v846
    %v949 = vunpack.c.h.b16 %v846
    %v950 = vunpack.c.l.b16 %v847
    %v951 = vunpack.c.h.b16 %v847
    %v952 = vunpack.c.l.b16 %v848
    %v953 = vunpack.c.h.b16 %v848
    %v954 = vunpack.c.l.b16 %v849
    %v955 = vunpack.c.h.b16 %v849
    %v956 = vunpack.c.l.b16 %v850
    %v957 = vunpack.c.h.b16 %v850
    %v958 = vpack.c.b16 %v896, %v894
    %v959 = vpack.c.b16 %v897, %v895
    %v960 = vpack.c.b16 %v900, %v898
    %v961 = vpack.c.b16 %v901, %v899
    %v962 = vpack.c.b16 %v904, %v902
    %v963 = vpack.c.b16 %v905, %v903
    %v964 = vpack.c.b16 %v908, %v906
    %v965 = vpack.c.b16 %v909, %v907
    %v966 = vpack.c.b16 %v912, %v910
    %v967 = vpack.c.b16 %v913, %v911
    %v968 = vpack.c.b16 %v916, %v914
    %v969 = vpack.c.b16 %v917, %v915
    %v970 = vpack.c.b16 %v920, %v918
    %v971 = vpack.c.b16 %v921, %v919
    %v972 = vpack.c.b16 %v924, %v922
    %v973 = vpack.c.b16 %v925, %v923
    %v974 = vpack.c.b16 %v928, %v926
    %v975 = vpack.c.b16 %v929, %v927
    %v976 = vpack.c.b16 %v932, %v930
    %v977 = vpack.c.b16 %v933, %v931
    %v978 = vpack.c.b16 %v936, %v934
    %v979 = vpack.c.b16 %v937, %v935
    %v980 = vpack.c.b16 %v940, %v938
    %v981 = vpack.c.b16 %v941, %v939
    %v982 = vpack.c.b16 %v944, %v942
    %v983 = vpack.c.b16 %v945, %v943
    %v984 = vpack.c.b16 %v948, %v946
    %v985 = vpack.c.b16 %v949, %v947
    %v986 = vpack.c.b16 %v952, %v950
    %v987 = vpack.c.b16 %v953, %v951
    %v988 = vpack.c.b16 %v956, %v954
    %v989 = vpack.c.b16 %v957, %v955
    %1022 = vmatprep.subr.bf16.mxu0 %v959
    %1023 = vmatpush1.bf16.msra.mxu0 %v958
    %1024 = vmatprep.subr.bf16.mxu0 %v961
    %1025 = vmatpush1.bf16.msra.mxu0 %v960
    %1026 = vmatprep.subr.bf16.mxu0 %v963
    %1027 = vmatpush1.bf16.msra.mxu0 %v962
    %1028 = vmatprep.subr.bf16.mxu0 %v965
    %1029 = vmatpush1.bf16.msra.mxu0 %v964
    %1030 = vmatprep.subr.bf16.mxu0 %v967
    %1031 = vmatpush1.bf16.msra.mxu0 %v966
    %1032 = vmatprep.subr.bf16.mxu0 %v969
    %1033 = vmatpush1.bf16.msra.mxu0 %v968
    %1034 = vmatprep.subr.bf16.mxu0 %v971
    %1035 = vmatpush1.bf16.msra.mxu0 %v970
    %1036 = vmatprep.subr.bf16.mxu0 %v973
    %1037 = vmatpush1.bf16.msra.mxu0 %v972
    %1038 = vmatprep.subr.bf16.mxu0 %v975
    %1039 = vmatpush1.bf16.msra.mxu0 %v974
    %1040 = vmatprep.subr.bf16.mxu0 %v977
    %1041 = vmatpush1.bf16.msra.mxu0 %v976
    %1042 = vmatprep.subr.bf16.mxu0 %v979
    %1043 = vmatpush1.bf16.msra.mxu0 %v978
    %1044 = vmatprep.subr.bf16.mxu0 %v981
    %1045 = vmatpush1.bf16.msra.mxu0 %v980
    %1046 = vmatprep.subr.bf16.mxu0 %v983
    %1047 = vmatpush1.bf16.msra.mxu0 %v982
    %1048 = vmatprep.subr.bf16.mxu0 %v985
    %1049 = vmatpush1.bf16.msra.mxu0 %v984
    %1050 = vmatprep.subr.bf16.mxu0 %v987
    %1051 = vmatpush1.bf16.msra.mxu0 %v986
    %1052 = vmatprep.subr.bf16.mxu0 %v989
    %1053 = vmatpush1.bf16.msra.mxu0 %v988
    %1054 = vmatprep.mubr.bf16.mxu0 %v816
    %1055 = vmatmul.mubr.bf16.gmra.mrb[0].mxu0 %v815
    %v1056 = vpop.f32.mrb[0].mxu0
    %v1057 = vadd.f32 %v855, %v1056
    %v1058 = vpop.f32.mrb[0].mxu0
    %v1059 = vadd.f32 %v859, %v1058
    %v1060 = vpop.f32.mrb[0].mxu0
    %v1061 = vadd.f32 %v855, %v1060
    %v1062 = vpop.f32.mrb[0].mxu0
    %v1063 = vadd.f32 %v859, %v1062
    %1064 = vmatprep.mubr.bf16.mxu0 %v818
    %1065 = vmatmul.mubr.bf16.gmra.mrb[0].mxu0 %v817
    %v1066 = vpop.f32.mrb[0].mxu0
    %v1067 = vadd.f32 %v855, %v1066
    %v1068 = vpop.f32.mrb[0].mxu0
    %v1069 = vadd.f32 %v859, %v1068
    %v1070 = vpop.f32.mrb[0].mxu0
    %v1071 = vadd.f32 %v855, %v1070
    %v1072 = vpop.f32.mrb[0].mxu0
    %v1073 = vadd.f32 %v859, %v1072
    %1074 = vdwg.mxu0
    %v1075 = vmul.f32 %v1057, 0.5
    %v1076 = vmul.f32 %v1059, 0.5
    %v1077 = vmul.f32 %v1061, 0.5
    %v1078 = vmul.f32 %v1063, 0.5
    %v1079 = vmul.f32 %v1067, 0.5
    %v1080 = vmul.f32 %v1069, 0.5
    %v1081 = vmul.f32 %v1071, 0.5
    %v1082 = vmul.f32 %v1073, 0.5
    %v1083 = vmul.f32 %v1057, 0.044715
    %v1084 = vmul.f32 %v1059, 0.044715
    %v1085 = vmul.f32 %v1061, 0.044715
    %v1086 = vmul.f32 %v1063, 0.044715
    %v1087 = vmul.f32 %v1067, 0.044715
    %v1088 = vmul.f32 %v1069, 0.044715
    %v1089 = vmul.f32 %v1071, 0.044715
    %v1090 = vmul.f32 %v1073, 0.044715
    %v1091 = vmul.f32 %v1083, %v1057
    %v1092 = vmul.f32 %v1084, %v1059
    %v1093 = vmul.f32 %v1085, %v1061
    %v1094 = vmul.f32 %v1086, %v1063
    %v1095 = vmul.f32 %v1087, %v1067
    %v1096 = vmul.f32 %v1088, %v1069
    %v1097 = vmul.f32 %v1089, %v1071
    %v1098 = vmul.f32 %v1090, %v1073
    %v1099 = vmul.f32 %v1091, %v1057
    %v1100 = vmul.f32 %v1092, %v1059
    %v1101 = vmul.f32 %v1093, %v1061
    %v1102 = vmul.f32 %v1094, %v1063
    %v1103 = vmul.f32 %v1095, %v1067
    %v1104 = vmul.f32 %v1096, %v1069
    %v1105 = vmul.f32 %v1097, %v1071
    %v1106 = vmul.f32 %v1098, %v1073
    %v1107 = vadd.f32 %v1057, %v1099
    %v1108 = vadd.f32 %v1059, %v1100
    %v1109 = vadd.f32 %v1061, %v1101
    %v1110 = vadd.f32 %v1063, %v1102
    %v1111 = vadd.f32 %v1067, %v1103
    %v1112 = vadd.f32 %v1069, %v1104
    %v1113 = vadd.f32 %v1071, %v1105
    %v1114 = vadd.f32 %v1073, %v1106
    %v1115 = vmul.f32 %v1107, 0.7978846
    %v1116 = vmul.f32 %v1108, 0.7978846
    %v1117 = vmul.f32 %v1109, 0.7978846
    %v1118 = vmul.f32 %v1110, 0.7978846
    %v1119 = vmul.f32 %v1111, 0.7978846
    %v1120 = vmul.f32 %v1112, 0.7978846
    %v1121 = vmul.f32 %v1113, 0.7978846
    %v1122 = vmul.f32 %v1114, 0.7978846
    %v1123 = vtanh.pop %v1115
    %v1124 = vtanh.pop %v1116
    %v1125 = vtanh.pop %v1117
    %v1126 = vtanh.pop %v1118
    %v1127 = vtanh.pop %v1119
    %v1128 = vtanh.pop %v1120
    %v1129 = vtanh.pop %v1121
    %v1130 = vtanh.pop %v1122
    %v1131 = vadd.f32 %v1123, 1.0
    %v1132 = vadd.f32 %v1124, 1.0
    %v1133 = vadd.f32 %v1125, 1.0
    %v1134 = vadd.f32 %v1126, 1.0
    %v1135 = vadd.f32 %v1127, 1.0
    %v1136 = vadd.f32 %v1128, 1.0
    %v1137 = vadd.f32 %v1129, 1.0
    %v1138 = vadd.f32 %v1130, 1.0
    %v1139 = vmul.f32 %v1075, %v1131
    %v1140 = vmul.f32 %v1076, %v1132
    %v1141 = vmul.f32 %v1077, %v1133
    %v1142 = vmul.f32 %v1078, %v1134
    %v1143 = vmul.f32 %v1079, %v1135
    %v1144 = vmul.f32 %v1080, %v1136
    %v1145 = vmul.f32 %v1081, %v1137
    %v1146 = vmul.f32 %v1082, %v1138
    %v1148 = vlaneseq
    %v1149 = vshrl.u32 %v1148, 7
    %v1150 = vsub.s32 0, %v1149
    %v1151 = vrot.slane %v81, %v1150
    %v1152 = vlaneseq
    %v1153 = vshrl.u32 %v1152, 7
    %v1154 = vsub.s32 1, %v1153
    %v1155 = vrot.slane %v81, %v1154
    %v1158 = vmul.f32 %v1139, %v1151
    %v1159 = vmul.f32 %v1140, %v1155
    %v1160 = vmul.f32 %v1141, %v1151
    %v1161 = vmul.f32 %v1142, %v1155
    %v1162 = vmul.f32 %v1143, %v1151
    %v1163 = vmul.f32 %v1144, %v1155
    %v1164 = vmul.f32 %v1145, %v1151
    %v1165 = vmul.f32 %v1146, %v1155
    %v1166 = vadd.f32 %v1158, %v1159
    %1167 = vadd.xlane.f32.xlu0 %v1166
    %v1168 = vpop.xlane.xlu0 %1167
    %v1169 = vadd.f32 %v1160, %v1161
    %1170 = vadd.xlane.f32.xlu0 %v1169
    %v1171 = vpop.xlane.xlu0 %1170
    %v1172 = vadd.f32 %v1162, %v1163
    %1173 = vadd.xlane.f32.xlu0 %v1172
    %v1174 = vpop.xlane.xlu0 %1173
    %v1175 = vadd.f32 %v1164, %v1165
    %1176 = vadd.xlane.f32.xlu0 %v1175
    %v1177 = vpop.xlane.xlu0 %1176
    %v1179 = vlaneseq
    %v1180 = vshrl.u32 %v1179, 7
    %v1181 = vsub.s32 0, %v1180
    %v1182 = vrot.slane %v82, %v1181
    %v1184 = vadd.f32 %v1168, %v1182
    %v1185 = vadd.f32 %v1171, %v1182
    %v1186 = vadd.f32 %v1174, %v1182
    %v1187 = vadd.f32 %v1177, %v1182
    %v1188 = vmax.f32 %v1184, 0.0
    %v1189 = vmax.f32 %v1185, 0.0
    %v1190 = vmax.f32 %v1186, 0.0
    %v1191 = vmax.f32 %v1187, 0.0
    %v1192 = vand.u32 2147483647, %v1184
    %v1193 = vand.u32 2147483647, %v1185
    %v1194 = vand.u32 2147483647, %v1186
    %v1195 = vand.u32 2147483647, %v1187
    %v1196 = vsub.f32 0.0, %v1192
    %v1197 = vsub.f32 0.0, %v1193
    %v1198 = vsub.f32 0.0, %v1194
    %v1199 = vsub.f32 0.0, %v1195
    %v1200 = vmul.f32 %v1196, 1.442695
    %v1201 = vpow.pop %v1200
    %v1202 = vmul.f32 %v1197, 1.442695
    %v1203 = vpow.pop %v1202
    %v1204 = vmul.f32 %v1198, 1.442695
    %v1205 = vpow.pop %v1204
    %v1206 = vmul.f32 %v1199, 1.442695
    %v1207 = vpow.pop %v1206
    %v1208 = vadd.f32 %v1201, 1.0
    %v1209 = vlog2.pop %v1208
    %v1210 = vmul.f32 %v1209, 0.6931472
    %v1211 = vmul.f32 -0.5, %v1201
    %v1212 = vadd.f32 %v1211, 1.0
    %v1213 = vmul.f32 %v1212, %v1201
    %v1214 = vand.u32 2147483647, %v1201
    %vm1215 = vcmp.lt.f32.partialorder %v1214, 0.0004427343
    %v1216 = vsel %vm1215, %v1213, %v1210
    %v1217 = vadd.f32 %v1203, 1.0
    %v1218 = vlog2.pop %v1217
    %v1219 = vmul.f32 %v1218, 0.6931472
    %v1220 = vmul.f32 -0.5, %v1203
    %v1221 = vadd.f32 %v1220, 1.0
    %v1222 = vmul.f32 %v1221, %v1203
    %v1223 = vand.u32 2147483647, %v1203
    %vm1224 = vcmp.lt.f32.partialorder %v1223, 0.0004427343
    %v1225 = vsel %vm1224, %v1222, %v1219
    %v1226 = vadd.f32 %v1205, 1.0
    %v1227 = vlog2.pop %v1226
    %v1228 = vmul.f32 %v1227, 0.6931472
    %v1229 = vmul.f32 -0.5, %v1205
    %v1230 = vadd.f32 %v1229, 1.0
    %v1231 = vmul.f32 %v1230, %v1205
    %v1232 = vand.u32 2147483647, %v1205
    %vm1233 = vcmp.lt.f32.partialorder %v1232, 0.0004427343
    %v1234 = vsel %vm1233, %v1231, %v1228
    %v1235 = vadd.f32 %v1207, 1.0
    %v1236 = vlog2.pop %v1235
    %v1237 = vmul.f32 %v1236, 0.6931472
    %v1238 = vmul.f32 -0.5, %v1207
    %v1239 = vadd.f32 %v1238, 1.0
    %v1240 = vmul.f32 %v1239, %v1207
    %v1241 = vand.u32 2147483647, %v1207
    %vm1242 = vcmp.lt.f32.partialorder %v1241, 0.0004427343
    %v1243 = vsel %vm1242, %v1240, %v1237
    %v1244 = vadd.f32 %v1188, %v1216
    %v1245 = vadd.f32 %v1189, %v1225
    %v1246 = vadd.f32 %v1190, %v1234
    %v1247 = vadd.f32 %v1191, %v1243
    %1248 = vst [vmem:[#allocation10] sm:$0xff] %v1244
    %1249 = vst [vmem:[#allocation10 + $0x8] sm:$0xff] %v1245
    %1250 = vst [vmem:[#allocation10 + $0x10] sm:$0xff] %v1246
    %1251 = vst [vmem:[#allocation10 + $0x18] sm:$0xff] %v1247
    // Predicated region
    $region38: #{tpu_custom_call.1} parent=1 // pred_check
      _
    $region39: #{tpu_custom_call.1} parent=1 // pred_check_branch
      %1253 = sbr.rel (0) target = $region41
    $region40: #{tpu_custom_call.1} parent=1 // pred_region
      %s1255 = ssub.s32 512, 512
      %1256 = vsyncadd [#allocation4], %s1255
      %s1257 = sshll.u32 [#allocation10], 4
      %s1258 = int_to_ptr.vmem [resolvable:$true] %s1257
      %1263 = dma.vmem_to_hbm [thread:$0]  %s1258, 512, %s5, [#allocation4], 128, 128, 8
    $region41: #{tpu_custom_call.1} parent=1 // pred_fallthru
      _
    // Predicated region
    $region42: #{tpu_custom_call.1} parent=1 // pred_check
      _
    $region43: #{tpu_custom_call.1} parent=1 // pred_check_branch
      %1265 = sbr.rel (0) target = $region45
    $region44: #{tpu_custom_call.1} parent=1 // pred_region
      %1266 = dma.done [#allocation4], 512
    $region45: #{tpu_custom_call.1} parent=1 // pred_fallthru
      _
    %1267 = vsyncpa [#allocation3], 1
    %1268 = vsyncpa [#allocation6], 1
    %1269 = vsyncpa [#allocation9], 1
    %1270 = vsyncpa [#allocation4], 1

</llo_original>
